<compile_context>
chip_gen: v6e
topology: v6e:2x2x1
jax: 0.10.0
libtpu: 0.0.40
codegen_flags: <defaults>
</compile_context>

<pallas_src>
import jax
import jax.numpy as jnp
from jax import lax
from jax.experimental import pallas as pl
from jax.experimental.pallas import tpu as pltpu

# ----------------------------- small synthetic BERT config ------------------------------
VOCAB = 100          # vocab size (synthetic)
HIDDEN = 32          # bert.config.hidden_size  -> output_dim
N_HEADS = 2
HEAD_DIM = HIDDEN // N_HEADS
N_LAYERS = 2
INTERMEDIATE = 64
MAX_POS = 16
SEQ = 8
BATCH = 2
M = BATCH * SEQ      # tokens per call
PM = N_HEADS * M     # packed (head, batch, seq) rows for attention
LN_EPS = 1e-12       # HF BERT layer_norm_eps


# ------------------------------------ fused kernel --------------------------------------
def _bert_encoder_kernel(
    emb_ref, bias_ref, eg_ref, eb_ref,
    wqkv_ref, bqkv_ref, wo_ref, bo_ref, ln1g_ref, ln1b_ref,
    wi_ref, bi_ref, wo2_ref, bo2_ref, ln2g_ref, ln2b_ref,
    out_ref,
):
    f32 = jnp.float32
    bf16 = jnp.bfloat16

    def layernorm(x, g, b):
        mu = jnp.mean(x, axis=-1, keepdims=True)
        xc = x - mu
        var = jnp.mean(xc * xc, axis=-1, keepdims=True)
        return xc * lax.rsqrt(var + f32(LN_EPS)) * g + b

    def matmul(x, w_bf16):
        # Activations cast to bf16; weights are ALREADY bf16 (pre-cast in wrapper).
        return lax.dot_general(
            x.astype(bf16), w_bf16,
            dimension_numbers=(((1,), (0,)), ((), ())),
            preferred_element_type=jnp.float32)

    def gelu(x):
        # Exact (erf-based) GELU, as in HF bert-base-uncased (hidden_act='gelu').
        # erf via Abramowitz & Stegun 7.1.26 (max abs err ~1.5e-7), exp + VPU ops only.
        z = x * f32(0.7071067811865476)
        az = jnp.abs(z)
        t = 1.0 / (1.0 + f32(0.3275911) * az)
        poly = ((((f32(1.061405429) * t + f32(-1.453152027)) * t
                  + f32(1.421413741)) * t + f32(-0.284496736)) * t
                + f32(0.254829592)) * t
        erf_abs = 1.0 - poly * jnp.exp(-az * az)
        erf_z = jnp.where(z < 0, -erf_abs, erf_abs)
        return 0.5 * x * (1.0 + erf_z)

    def pack_heads(x):
        # [M, H] (cols head-major) -> [N_HEADS*M, HEAD_DIM], rows ordered (head, batch, seq)
        return jnp.concatenate(
            [x[:, hh * HEAD_DIM:(hh + 1) * HEAD_DIM] for hh in range(N_HEADS)], axis=0)

    def unpack_heads(x):
        # [N_HEADS*M, HEAD_DIM] -> [M, H] (cols head-major)
        return jnp.concatenate(
            [x[hh * M:(hh + 1) * M, :] for hh in range(N_HEADS)], axis=1)

    # ----- embedding LayerNorm -----
    h = layernorm(emb_ref[...].astype(f32), eg_ref[...], eb_ref[...])      # [M, H]

    scale = f32(1.0 / (HEAD_DIM ** 0.5))
    bias = bias_ref[...]                                                    # [PM, PM]

    for li in range(N_LAYERS):
        # ----- fused QKV projection: one matmul for wq|wk|wv -----
        qkv = matmul(h, wqkv_ref[li]) + bqkv_ref[li]                        # [M, 3H]

        # ----- packed attention: all (batch, head) pairs in two matmuls -----
        qp = pack_heads(qkv[:, 0 * HIDDEN:1 * HIDDEN])                      # [PM, Dh]
        kp = pack_heads(qkv[:, 1 * HIDDEN:2 * HIDDEN])
        vp = pack_heads(qkv[:, 2 * HIDDEN:3 * HIDDEN])

        s = lax.dot_general(                                                # Q @ K^T
            qp.astype(bf16), kp.astype(bf16),
            dimension_numbers=(((1,), (1,)), ((), ())),
            preferred_element_type=jnp.float32) * scale + bias              # [PM, PM]

        mrow = jnp.max(s, axis=-1, keepdims=True)
        p = jnp.exp(s - mrow)
        p = p * pl.reciprocal(jnp.sum(p, axis=-1, keepdims=True), approx=True)

        ctx_p = lax.dot_general(                                            # P @ V
            p.astype(bf16), vp.astype(bf16),
            dimension_numbers=(((1,), (0,)), ((), ())),
            preferred_element_type=jnp.float32)                             # [PM, Dh]
        ctx = unpack_heads(ctx_p)                                           # [M, H]

        # ----- attention output projection + residual + LN -----
        attn_out = matmul(ctx, wo_ref[li]) + bo_ref[li]
        h = layernorm(h + attn_out, ln1g_ref[li], ln1b_ref[li])

        # ----- FFN (exact GELU) + residual + LN -----
        inter = gelu(matmul(h, wi_ref[li]) + bi_ref[li])
        ffn_out = matmul(inter, wo2_ref[li]) + bo2_ref[li]
        h = layernorm(h + ffn_out, ln2g_ref[li], ln2b_ref[li])

    # Emit only the CLS rows (row 0 of each batch's sequence).
    cls = jnp.concatenate([h[b * SEQ:b * SEQ + 1, :] for b in range(BATCH)], axis=0)
    out_ref[...] = cls.astype(out_ref.dtype)


def _full_spec(shape):
    return pl.BlockSpec(shape, lambda i, _nd=len(shape): (0,) * _nd)


def bert_encoder_fused(emb, attn_bias, emb_ln_g, emb_ln_b, layer_stacks):
    """Runs the full encoder in a single pallas_call. Returns CLS embeddings [BATCH, H]."""
    inputs = (emb, attn_bias, emb_ln_g, emb_ln_b) + layer_stacks
    return pl.pallas_call(
        _bert_encoder_kernel,
        out_shape=jax.ShapeDtypeStruct((BATCH, HIDDEN), jnp.float32),
        grid=(1,),
        in_specs=[_full_spec(x.shape) for x in inputs],
        out_specs=pl.BlockSpec((BATCH, HIDDEN), lambda i: (0, 0)),
        compiler_params=pltpu.CompilerParams(
            dimension_semantics=("arbitrary",),
        ),
    )(*inputs)


# --------------------------------- parameter construction -------------------------------
def init_params(key):
    std = 0.02

    def nrm(k, shape):
        return std * jax.random.normal(k, shape, dtype=jnp.float32)

    keys = jax.random.split(key, 4 + N_LAYERS)
    params = {
        "word_emb": nrm(keys[0], (VOCAB, HIDDEN)),
        "pos_emb": nrm(keys[1], (MAX_POS, HIDDEN)),
        "tok_emb": nrm(keys[2], (2, HIDDEN)),
        "emb_ln_g": jnp.ones((HIDDEN,), jnp.float32),
        "emb_ln_b": jnp.zeros((HIDDEN,), jnp.float32),
        "layers": [],
    }
    for li in range(N_LAYERS):
        lkeys = jax.random.split(keys[4 + li], 6)
        layer = {
            "wq": nrm(lkeys[0], (HIDDEN, HIDDEN)), "bq": jnp.zeros((HIDDEN,), jnp.float32),
            "wk": nrm(lkeys[1], (HIDDEN, HIDDEN)), "bk": jnp.zeros((HIDDEN,), jnp.float32),
            "wv": nrm(lkeys[2], (HIDDEN, HIDDEN)), "bv": jnp.zeros((HIDDEN,), jnp.float32),
            "wo": nrm(lkeys[3], (HIDDEN, HIDDEN)), "bo": jnp.zeros((HIDDEN,), jnp.float32),
            "ln1_g": jnp.ones((HIDDEN,), jnp.float32), "ln1_b": jnp.zeros((HIDDEN,), jnp.float32),
            "wi": nrm(lkeys[4], (HIDDEN, INTERMEDIATE)), "bi": jnp.zeros((INTERMEDIATE,), jnp.float32),
            "wo2": nrm(lkeys[5], (INTERMEDIATE, HIDDEN)), "bo2": jnp.zeros((HIDDEN,), jnp.float32),
            "ln2_g": jnp.ones((HIDDEN,), jnp.float32), "ln2_b": jnp.zeros((HIDDEN,), jnp.float32),
        }
        params["layers"].append(layer)
    return params


def _stack_layer_params(layers):
    """Stack per-layer weights along a leading layer axis; merge wq|wk|wv -> [L, H, 3H].

    Matmul weight stacks are pre-cast to bf16 (MXU operand dtype) so the kernel does no
    weight casts and the HBM->VMEM weight DMA is halved. Biases / LN params stay f32.
    """
    bf16 = jnp.bfloat16
    wqkv = jnp.stack(
        [jnp.concatenate([l["wq"], l["wk"], l["wv"]], axis=1) for l in layers]).astype(bf16)
    bqkv = jnp.stack([jnp.concatenate([l["bq"], l["bk"], l["bv"]])[None, :] for l in layers])
    matb = lambda n: jnp.stack([l[n] for l in layers]).astype(bf16)         # [L, K, N] bf16
    vec = lambda n: jnp.stack([l[n][None, :] for l in layers])              # [L, 1, N] f32
    return (wqkv, bqkv,
            matb("wo"), vec("bo"), vec("ln1_g"), vec("ln1_b"),
            matb("wi"), vec("bi"), matb("wo2"), vec("bo2"),
            vec("ln2_g"), vec("ln2_b"))


# ------------------------------------- forward pass -------------------------------------
@jax.jit
def bert_text_encoder_forward(params, input_ids, attention_mask):
    """Returns the CLS token embedding [batch, hidden] (== last_hidden_state[:, 0, :])."""
    B, S = input_ids.shape

    # Embedding gather + sum (glue); everything downstream runs in the fused Pallas kernel.
    word = jnp.take(params["word_emb"], input_ids, axis=0)               # [B, S, H]
    pos = params["pos_emb"][:S][None, :, :]                              # [1, S, H]
    tok = params["tok_emb"][0][None, None, :]                            # token_type_id = 0
    emb = (word + pos + tok).reshape(B * S, HIDDEN)

    # Full additive attention bias for the packed [N_HEADS*B*S] layout (rows/cols ordered
    # (head, batch, seq)): HF padding bias (-10000 on padded keys) + block-diagonal -1e9
    # mask so distinct (batch, head) groups never attend to each other.
    pad = ((1.0 - attention_mask.astype(jnp.float32)) * -10000.0).reshape(-1)   # [B*S], (b,s)
    key_bias = jnp.tile(pad, (N_HEADS,))                                        # [PM], (h,b,s)
    grp = jnp.repeat(jnp.arange(N_HEADS * B), S)                                # group = h*B + b
    block = jnp.where(grp[:, None] == grp[None, :], 0.0, -1e9).astype(jnp.float32)
    attn_bias = block + key_bias[None, :]                                       # [PM, PM]

    layer_stacks = _stack_layer_params(params["layers"])
    cls_output = bert_encoder_fused(
        emb, attn_bias,
        params["emb_ln_g"].reshape(1, HIDDEN), params["emb_ln_b"].reshape(1, HIDDEN),
        layer_stacks)                                                    # [B, H]
    # Original module returns last_hidden_state[:, 0, :] directly (no pooler);
    # the kernel already emits exactly those CLS rows.
    return cls_output


# ---------------------------------------- main -------------------------------------------
if __name__ == "__main__":
    key = jax.random.PRNGKey(0)
    pkey, ikey = jax.random.split(key)

    params = init_params(pkey)

    # TODO(synk): pretrained 'bert-base-uncased' checkpoint loading has no in-script
    # equivalent; weights here are deterministic synthetic initializations.
    input_ids = jax.random.randint(ikey, (BATCH, SEQ), 0, VOCAB, dtype=jnp.int32)
    attention_mask = jnp.array(
        [[1, 1, 1, 1, 1, 1, 1, 1],
         [1, 1, 1, 1, 1, 0, 0, 0]], dtype=jnp.int32)

    cls = bert_text_encoder_forward(params, input_ids, attention_mask)
    cls = jax.block_until_ready(cls)
    assert cls.shape == (BATCH, HIDDEN) and cls.dtype == jnp.float32
    assert bool(jnp.all(jnp.isfinite(cls)))
    print("KERNEL_OK")
</pallas_src>

<mosaic_0001>
module attributes {stable_mosaic.version = 11 : i64} {
  func.func @_bert_encoder_kernel(%arg0: i32, %arg1: memref<16x32xf32, #tpu.memory_space<vmem>>, %arg2: memref<32x32xf32, #tpu.memory_space<vmem>>, %arg3: memref<1x32xf32, #tpu.memory_space<vmem>>, %arg4: memref<1x32xf32, #tpu.memory_space<vmem>>, %arg5: memref<2x32x96xbf16, #tpu.memory_space<vmem>>, %arg6: memref<2x1x96xf32, #tpu.memory_space<vmem>>, %arg7: memref<2x32x32xbf16, #tpu.memory_space<vmem>>, %arg8: memref<2x1x32xf32, #tpu.memory_space<vmem>>, %arg9: memref<2x1x32xf32, #tpu.memory_space<vmem>>, %arg10: memref<2x1x32xf32, #tpu.memory_space<vmem>>, %arg11: memref<2x32x64xbf16, #tpu.memory_space<vmem>>, %arg12: memref<2x1x64xf32, #tpu.memory_space<vmem>>, %arg13: memref<2x64x32xbf16, #tpu.memory_space<vmem>>, %arg14: memref<2x1x32xf32, #tpu.memory_space<vmem>>, %arg15: memref<2x1x32xf32, #tpu.memory_space<vmem>>, %arg16: memref<2x1x32xf32, #tpu.memory_space<vmem>>, %arg17: memref<2x32xf32, #tpu.memory_space<vmem>>) attributes {dimension_semantics = [#tpu.dimension_semantics<arbitrary>], iteration_bounds = array<i64: 1>, scalar_prefetch = 0 : i64, scratch_operands = 0 : i64, tpu.core_type = #tpu.core_type<tc>, window_params = [{pipeline_mode = #tpu.pipeline_mode<synchronous>, transform_indices = @transform_0, window_bounds = array<i64: 16, 32>}, {pipeline_mode = #tpu.pipeline_mode<synchronous>, transform_indices = @transform_1, window_bounds = array<i64: 32, 32>}, {pipeline_mode = #tpu.pipeline_mode<synchronous>, transform_indices = @transform_2, window_bounds = array<i64: 1, 32>}, {pipeline_mode = #tpu.pipeline_mode<synchronous>, transform_indices = @transform_3, window_bounds = array<i64: 1, 32>}, {pipeline_mode = #tpu.pipeline_mode<synchronous>, transform_indices = @transform_4, window_bounds = array<i64: 2, 32, 96>}, {pipeline_mode = #tpu.pipeline_mode<synchronous>, transform_indices = @transform_5, window_bounds = array<i64: 2, 1, 96>}, {pipeline_mode = #tpu.pipeline_mode<synchronous>, transform_indices = @transform_6, window_bounds = array<i64: 2, 32, 32>}, {pipeline_mode = #tpu.pipeline_mode<synchronous>, transform_indices = @transform_7, window_bounds = array<i64: 2, 1, 32>}, {pipeline_mode = #tpu.pipeline_mode<synchronous>, transform_indices = @transform_8, window_bounds = array<i64: 2, 1, 32>}, {pipeline_mode = #tpu.pipeline_mode<synchronous>, transform_indices = @transform_9, window_bounds = array<i64: 2, 1, 32>}, {pipeline_mode = #tpu.pipeline_mode<synchronous>, transform_indices = @transform_10, window_bounds = array<i64: 2, 32, 64>}, {pipeline_mode = #tpu.pipeline_mode<synchronous>, transform_indices = @transform_11, window_bounds = array<i64: 2, 1, 64>}, {pipeline_mode = #tpu.pipeline_mode<synchronous>, transform_indices = @transform_12, window_bounds = array<i64: 2, 64, 32>}, {pipeline_mode = #tpu.pipeline_mode<synchronous>, transform_indices = @transform_13, window_bounds = array<i64: 2, 1, 32>}, {pipeline_mode = #tpu.pipeline_mode<synchronous>, transform_indices = @transform_14, window_bounds = array<i64: 2, 1, 32>}, {pipeline_mode = #tpu.pipeline_mode<synchronous>, transform_indices = @transform_15, window_bounds = array<i64: 2, 1, 32>}, {pipeline_mode = #tpu.pipeline_mode<synchronous>, transform_indices = @transform_16, window_bounds = array<i64: 2, 32>}]} {
    %c0 = arith.constant 0 : index
    %c0_0 = arith.constant 0 : index
    %0 = vector.load %arg1[%c0, %c0_0] : memref<16x32xf32, #tpu.memory_space<vmem>>, vector<16x32xf32>
    %c0_1 = arith.constant 0 : index
    %c0_2 = arith.constant 0 : index
    %1 = vector.load %arg3[%c0_1, %c0_2] : memref<1x32xf32, #tpu.memory_space<vmem>>, vector<1x32xf32>
    %c0_3 = arith.constant 0 : index
    %c0_4 = arith.constant 0 : index
    %2 = vector.load %arg4[%c0_3, %c0_4] : memref<1x32xf32, #tpu.memory_space<vmem>>, vector<1x32xf32>
    %cst = arith.constant dense<0.000000e+00> : vector<16xf32>
    %3 = vector.multi_reduction <add>, %0, %cst [1] : vector<16x32xf32> to vector<16xf32>
    %4 = vector.shape_cast %3 : vector<16xf32> to vector<16x1xf32>
    %cst_5 = arith.constant 3.200000e+01 : f32
    %5 = vector.broadcast %cst_5 : f32 to vector<16x1xf32>
    %6 = arith.divf %4, %5 : vector<16x1xf32>
    %7 = vector.broadcast %6 : vector<16x1xf32> to vector<16x32xf32>
    %8 = arith.subf %0, %7 : vector<16x32xf32>
    %9 = arith.mulf %8, %8 : vector<16x32xf32>
    %cst_6 = arith.constant dense<0.000000e+00> : vector<16xf32>
    %10 = vector.multi_reduction <add>, %9, %cst_6 [1] : vector<16x32xf32> to vector<16xf32>
    %11 = vector.shape_cast %10 : vector<16xf32> to vector<16x1xf32>
    %cst_7 = arith.constant 3.200000e+01 : f32
    %12 = vector.broadcast %cst_7 : f32 to vector<16x1xf32>
    %13 = arith.divf %11, %12 : vector<16x1xf32>
    %cst_8 = arith.constant 9.99999996E-13 : f32
    %14 = vector.broadcast %cst_8 : f32 to vector<16x1xf32>
    %15 = arith.addf %13, %14 : vector<16x1xf32>
    %16 = math.rsqrt %15 : vector<16x1xf32>
    %17 = vector.broadcast %16 : vector<16x1xf32> to vector<16x32xf32>
    %18 = arith.mulf %8, %17 : vector<16x32xf32>
    %19 = vector.broadcast %1 : vector<1x32xf32> to vector<16x32xf32>
    %20 = arith.mulf %18, %19 : vector<16x32xf32>
    %21 = vector.broadcast %2 : vector<1x32xf32> to vector<16x32xf32>
    %22 = arith.addf %20, %21 : vector<16x32xf32>
    %c0_9 = arith.constant 0 : index
    %c0_10 = arith.constant 0 : index
    %23 = vector.load %arg2[%c0_9, %c0_10] : memref<32x32xf32, #tpu.memory_space<vmem>>, vector<32x32xf32>
    %c0_11 = arith.constant 0 : index
    %c0_12 = arith.constant 0 : index
    %c0_13 = arith.constant 0 : index
    %24 = vector.load %arg5[%c0_11, %c0_12, %c0_13] : memref<2x32x96xbf16, #tpu.memory_space<vmem>>, vector<1x32x96xbf16>
    %25 = vector.shape_cast %24 : vector<1x32x96xbf16> to vector<32x96xbf16>
    %26 = arith.truncf %22 : vector<16x32xf32> to vector<16x32xbf16>
    %cst_14 = arith.constant dense<0.000000e+00> : vector<16x96xf32>
    %27 = tpu.matmul %26, %25, %cst_14 {dimension_numbers = #tpu.dot_dimension_numbers<[1], [0], [0], [1], [0, 0, 1, 1], [], []>} : vector<16x32xbf16>, vector<32x96xbf16>, vector<16x96xf32> -> vector<16x96xf32>
    %c0_15 = arith.constant 0 : index
    %c0_16 = arith.constant 0 : index
    %c0_17 = arith.constant 0 : index
    %28 = vector.load %arg6[%c0_15, %c0_16, %c0_17] : memref<2x1x96xf32, #tpu.memory_space<vmem>>, vector<1x1x96xf32>
    %29 = vector.shape_cast %28 : vector<1x1x96xf32> to vector<1x96xf32>
    %30 = vector.broadcast %29 : vector<1x96xf32> to vector<16x96xf32>
    %31 = arith.addf %27, %30 : vector<16x96xf32>
    %32 = vector.extract_strided_slice %31 {offsets = [0, 0], sizes = [16, 32], strides = [1, 1]} : vector<16x96xf32> to vector<16x32xf32>
    %33 = vector.extract_strided_slice %32 {offsets = [0, 0], sizes = [16, 16], strides = [1, 1]} : vector<16x32xf32> to vector<16x16xf32>
    %34 = vector.extract_strided_slice %32 {offsets = [0, 16], sizes = [16, 16], strides = [1, 1]} : vector<16x32xf32> to vector<16x16xf32>
    %35 = tpu.concatenate %33, %34 in 0 : vector<16x16xf32>, vector<16x16xf32> -> vector<32x16xf32>
    %36 = vector.extract_strided_slice %31 {offsets = [0, 32], sizes = [16, 32], strides = [1, 1]} : vector<16x96xf32> to vector<16x32xf32>
    %37 = vector.extract_strided_slice %36 {offsets = [0, 0], sizes = [16, 16], strides = [1, 1]} : vector<16x32xf32> to vector<16x16xf32>
    %38 = vector.extract_strided_slice %36 {offsets = [0, 16], sizes = [16, 16], strides = [1, 1]} : vector<16x32xf32> to vector<16x16xf32>
    %39 = tpu.concatenate %37, %38 in 0 : vector<16x16xf32>, vector<16x16xf32> -> vector<32x16xf32>
    %40 = vector.extract_strided_slice %31 {offsets = [0, 64], sizes = [16, 32], strides = [1, 1]} : vector<16x96xf32> to vector<16x32xf32>
    %41 = vector.extract_strided_slice %40 {offsets = [0, 0], sizes = [16, 16], strides = [1, 1]} : vector<16x32xf32> to vector<16x16xf32>
    %42 = vector.extract_strided_slice %40 {offsets = [0, 16], sizes = [16, 16], strides = [1, 1]} : vector<16x32xf32> to vector<16x16xf32>
    %43 = tpu.concatenate %41, %42 in 0 : vector<16x16xf32>, vector<16x16xf32> -> vector<32x16xf32>
    %44 = arith.truncf %35 : vector<32x16xf32> to vector<32x16xbf16>
    %45 = arith.truncf %39 : vector<32x16xf32> to vector<32x16xbf16>
    %cst_18 = arith.constant dense<0.000000e+00> : vector<32x32xf32>
    %46 = tpu.matmul %44, %45, %cst_18 {dimension_numbers = #tpu.dot_dimension_numbers<[1], [1], [0], [0], [0, 0, 1, 0], [], []>} : vector<32x16xbf16>, vector<32x16xbf16>, vector<32x32xf32> -> vector<32x32xf32>
    %cst_19 = arith.constant 2.500000e-01 : f32
    %47 = vector.broadcast %cst_19 : f32 to vector<32x32xf32>
    %48 = arith.mulf %46, %47 : vector<32x32xf32>
    %49 = arith.addf %48, %23 : vector<32x32xf32>
    %cst_20 = arith.constant dense<0xFF800000> : vector<32xf32>
    %50 = vector.multi_reduction <maximumf>, %49, %cst_20 [1] : vector<32x32xf32> to vector<32xf32>
    %51 = vector.shape_cast %50 : vector<32xf32> to vector<32x1xf32>
    %52 = vector.broadcast %51 : vector<32x1xf32> to vector<32x32xf32>
    %53 = arith.subf %49, %52 : vector<32x32xf32>
    %54 = math.exp %53 : vector<32x32xf32>
    %cst_21 = arith.constant dense<0.000000e+00> : vector<32xf32>
    %55 = vector.multi_reduction <add>, %54, %cst_21 [1] : vector<32x32xf32> to vector<32xf32>
    %56 = vector.shape_cast %55 : vector<32xf32> to vector<32x1xf32>
    %57 = tpu.reciprocal %56 {approx = true} : vector<32x1xf32> -> vector<32x1xf32>
    %58 = vector.broadcast %57 : vector<32x1xf32> to vector<32x32xf32>
    %59 = arith.mulf %54, %58 : vector<32x32xf32>
    %60 = arith.truncf %59 : vector<32x32xf32> to vector<32x32xbf16>
    %61 = arith.truncf %43 : vector<32x16xf32> to vector<32x16xbf16>
    %cst_22 = arith.constant dense<0.000000e+00> : vector<32x16xf32>
    %62 = tpu.matmul %60, %61, %cst_22 {dimension_numbers = #tpu.dot_dimension_numbers<[1], [0], [0], [1], [0, 0, 1, 1], [], []>} : vector<32x32xbf16>, vector<32x16xbf16>, vector<32x16xf32> -> vector<32x16xf32>
    %63 = vector.extract_strided_slice %62 {offsets = [0, 0], sizes = [16, 16], strides = [1, 1]} : vector<32x16xf32> to vector<16x16xf32>
    %64 = vector.extract_strided_slice %62 {offsets = [16, 0], sizes = [16, 16], strides = [1, 1]} : vector<32x16xf32> to vector<16x16xf32>
    %65 = tpu.concatenate %63, %64 in 1 : vector<16x16xf32>, vector<16x16xf32> -> vector<16x32xf32>
    %c0_23 = arith.constant 0 : index
    %c0_24 = arith.constant 0 : index
    %c0_25 = arith.constant 0 : index
    %66 = vector.load %arg7[%c0_23, %c0_24, %c0_25] : memref<2x32x32xbf16, #tpu.memory_space<vmem>>, vector<1x32x32xbf16>
    %67 = vector.shape_cast %66 : vector<1x32x32xbf16> to vector<32x32xbf16>
    %68 = arith.truncf %65 : vector<16x32xf32> to vector<16x32xbf16>
    %cst_26 = arith.constant dense<0.000000e+00> : vector<16x32xf32>
    %69 = tpu.matmul %68, %67, %cst_26 {dimension_numbers = #tpu.dot_dimension_numbers<[1], [0], [0], [1], [0, 0, 1, 1], [], []>} : vector<16x32xbf16>, vector<32x32xbf16>, vector<16x32xf32> -> vector<16x32xf32>
    %c0_27 = arith.constant 0 : index
    %c0_28 = arith.constant 0 : index
    %c0_29 = arith.constant 0 : index
    %70 = vector.load %arg8[%c0_27, %c0_28, %c0_29] : memref<2x1x32xf32, #tpu.memory_space<vmem>>, vector<1x1x32xf32>
    %71 = vector.shape_cast %70 : vector<1x1x32xf32> to vector<1x32xf32>
    %72 = vector.broadcast %71 : vector<1x32xf32> to vector<16x32xf32>
    %73 = arith.addf %69, %72 : vector<16x32xf32>
    %74 = arith.addf %22, %73 : vector<16x32xf32>
    %c0_30 = arith.constant 0 : index
    %c0_31 = arith.constant 0 : index
    %c0_32 = arith.constant 0 : index
    %75 = vector.load %arg9[%c0_30, %c0_31, %c0_32] : memref<2x1x32xf32, #tpu.memory_space<vmem>>, vector<1x1x32xf32>
    %76 = vector.shape_cast %75 : vector<1x1x32xf32> to vector<1x32xf32>
    %c0_33 = arith.constant 0 : index
    %c0_34 = arith.constant 0 : index
    %c0_35 = arith.constant 0 : index
    %77 = vector.load %arg10[%c0_33, %c0_34, %c0_35] : memref<2x1x32xf32, #tpu.memory_space<vmem>>, vector<1x1x32xf32>
    %78 = vector.shape_cast %77 : vector<1x1x32xf32> to vector<1x32xf32>
    %cst_36 = arith.constant dense<0.000000e+00> : vector<16xf32>
    %79 = vector.multi_reduction <add>, %74, %cst_36 [1] : vector<16x32xf32> to vector<16xf32>
    %80 = vector.shape_cast %79 : vector<16xf32> to vector<16x1xf32>
    %cst_37 = arith.constant 3.200000e+01 : f32
    %81 = vector.broadcast %cst_37 : f32 to vector<16x1xf32>
    %82 = arith.divf %80, %81 : vector<16x1xf32>
    %83 = vector.broadcast %82 : vector<16x1xf32> to vector<16x32xf32>
    %84 = arith.subf %74, %83 : vector<16x32xf32>
    %85 = arith.mulf %84, %84 : vector<16x32xf32>
    %cst_38 = arith.constant dense<0.000000e+00> : vector<16xf32>
    %86 = vector.multi_reduction <add>, %85, %cst_38 [1] : vector<16x32xf32> to vector<16xf32>
    %87 = vector.shape_cast %86 : vector<16xf32> to vector<16x1xf32>
    %cst_39 = arith.constant 3.200000e+01 : f32
    %88 = vector.broadcast %cst_39 : f32 to vector<16x1xf32>
    %89 = arith.divf %87, %88 : vector<16x1xf32>
    %cst_40 = arith.constant 9.99999996E-13 : f32
    %90 = vector.broadcast %cst_40 : f32 to vector<16x1xf32>
    %91 = arith.addf %89, %90 : vector<16x1xf32>
    %92 = math.rsqrt %91 : vector<16x1xf32>
    %93 = vector.broadcast %92 : vector<16x1xf32> to vector<16x32xf32>
    %94 = arith.mulf %84, %93 : vector<16x32xf32>
    %95 = vector.broadcast %76 : vector<1x32xf32> to vector<16x32xf32>
    %96 = arith.mulf %94, %95 : vector<16x32xf32>
    %97 = vector.broadcast %78 : vector<1x32xf32> to vector<16x32xf32>
    %98 = arith.addf %96, %97 : vector<16x32xf32>
    %c0_41 = arith.constant 0 : index
    %c0_42 = arith.constant 0 : index
    %c0_43 = arith.constant 0 : index
    %99 = vector.load %arg11[%c0_41, %c0_42, %c0_43] : memref<2x32x64xbf16, #tpu.memory_space<vmem>>, vector<1x32x64xbf16>
    %100 = vector.shape_cast %99 : vector<1x32x64xbf16> to vector<32x64xbf16>
    %101 = arith.truncf %98 : vector<16x32xf32> to vector<16x32xbf16>
    %cst_44 = arith.constant dense<0.000000e+00> : vector<16x64xf32>
    %102 = tpu.matmul %101, %100, %cst_44 {dimension_numbers = #tpu.dot_dimension_numbers<[1], [0], [0], [1], [0, 0, 1, 1], [], []>} : vector<16x32xbf16>, vector<32x64xbf16>, vector<16x64xf32> -> vector<16x64xf32>
    %c0_45 = arith.constant 0 : index
    %c0_46 = arith.constant 0 : index
    %c0_47 = arith.constant 0 : index
    %103 = vector.load %arg12[%c0_45, %c0_46, %c0_47] : memref<2x1x64xf32, #tpu.memory_space<vmem>>, vector<1x1x64xf32>
    %104 = vector.shape_cast %103 : vector<1x1x64xf32> to vector<1x64xf32>
    %105 = vector.broadcast %104 : vector<1x64xf32> to vector<16x64xf32>
    %106 = arith.addf %102, %105 : vector<16x64xf32>
    %cst_48 = arith.constant 0.707106769 : f32
    %107 = vector.broadcast %cst_48 : f32 to vector<16x64xf32>
    %108 = arith.mulf %106, %107 : vector<16x64xf32>
    %109 = math.absf %108 : vector<16x64xf32>
    %cst_49 = arith.constant 0.327591091 : f32
    %110 = vector.broadcast %cst_49 : f32 to vector<16x64xf32>
    %111 = arith.mulf %110, %109 : vector<16x64xf32>
    %cst_50 = arith.constant 1.000000e+00 : f32
    %112 = vector.broadcast %cst_50 : f32 to vector<16x64xf32>
    %113 = arith.addf %112, %111 : vector<16x64xf32>
    %cst_51 = arith.constant 1.000000e+00 : f32
    %114 = vector.broadcast %cst_51 : f32 to vector<16x64xf32>
    %115 = arith.divf %114, %113 : vector<16x64xf32>
    %cst_52 = arith.constant 1.06140542 : f32
    %116 = vector.broadcast %cst_52 : f32 to vector<16x64xf32>
    %117 = arith.mulf %116, %115 : vector<16x64xf32>
    %cst_53 = arith.constant -1.45315206 : f32
    %118 = vector.broadcast %cst_53 : f32 to vector<16x64xf32>
    %119 = arith.addf %117, %118 : vector<16x64xf32>
    %120 = arith.mulf %119, %115 : vector<16x64xf32>
    %cst_54 = arith.constant 1.42141378 : f32
    %121 = vector.broadcast %cst_54 : f32 to vector<16x64xf32>
    %122 = arith.addf %120, %121 : vector<16x64xf32>
    %123 = arith.mulf %122, %115 : vector<16x64xf32>
    %cst_55 = arith.constant -0.284496725 : f32
    %124 = vector.broadcast %cst_55 : f32 to vector<16x64xf32>
    %125 = arith.addf %123, %124 : vector<16x64xf32>
    %126 = arith.mulf %125, %115 : vector<16x64xf32>
    %cst_56 = arith.constant 0.254829586 : f32
    %127 = vector.broadcast %cst_56 : f32 to vector<16x64xf32>
    %128 = arith.addf %126, %127 : vector<16x64xf32>
    %129 = arith.mulf %128, %115 : vector<16x64xf32>
    %cst_57 = arith.constant 0.000000e+00 : f32
    %130 = vector.broadcast %cst_57 : f32 to vector<16x64xf32>
    %131 = arith.subf %130, %109 : vector<16x64xf32>
    %132 = arith.mulf %131, %109 : vector<16x64xf32>
    %133 = math.exp %132 : vector<16x64xf32>
    %134 = arith.mulf %129, %133 : vector<16x64xf32>
    %cst_58 = arith.constant 1.000000e+00 : f32
    %135 = vector.broadcast %cst_58 : f32 to vector<16x64xf32>
    %136 = arith.subf %135, %134 : vector<16x64xf32>
    %cst_59 = arith.constant 0.000000e+00 : f32
    %137 = vector.broadcast %cst_59 : f32 to vector<16x64xf32>
    %138 = arith.cmpf olt, %108, %137 : vector<16x64xf32>
    %cst_60 = arith.constant 0.000000e+00 : f32
    %139 = vector.broadcast %cst_60 : f32 to vector<16x64xf32>
    %140 = arith.subf %139, %136 : vector<16x64xf32>
    %141 = arith.select %138, %140, %136 : vector<16x64xi1>, vector<16x64xf32>
    %cst_61 = arith.constant 5.000000e-01 : f32
    %142 = vector.broadcast %cst_61 : f32 to vector<16x64xf32>
    %143 = arith.mulf %142, %106 : vector<16x64xf32>
    %cst_62 = arith.constant 1.000000e+00 : f32
    %144 = vector.broadcast %cst_62 : f32 to vector<16x64xf32>
    %145 = arith.addf %144, %141 : vector<16x64xf32>
    %146 = arith.mulf %143, %145 : vector<16x64xf32>
    %c0_63 = arith.constant 0 : index
    %c0_64 = arith.constant 0 : index
    %c0_65 = arith.constant 0 : index
    %147 = vector.load %arg13[%c0_63, %c0_64, %c0_65] : memref<2x64x32xbf16, #tpu.memory_space<vmem>>, vector<1x64x32xbf16>
    %148 = vector.shape_cast %147 : vector<1x64x32xbf16> to vector<64x32xbf16>
    %149 = arith.truncf %146 : vector<16x64xf32> to vector<16x64xbf16>
    %cst_66 = arith.constant dense<0.000000e+00> : vector<16x32xf32>
    %150 = tpu.matmul %149, %148, %cst_66 {dimension_numbers = #tpu.dot_dimension_numbers<[1], [0], [0], [1], [0, 0, 1, 1], [], []>} : vector<16x64xbf16>, vector<64x32xbf16>, vector<16x32xf32> -> vector<16x32xf32>
    %c0_67 = arith.constant 0 : index
    %c0_68 = arith.constant 0 : index
    %c0_69 = arith.constant 0 : index
    %151 = vector.load %arg14[%c0_67, %c0_68, %c0_69] : memref<2x1x32xf32, #tpu.memory_space<vmem>>, vector<1x1x32xf32>
    %152 = vector.shape_cast %151 : vector<1x1x32xf32> to vector<1x32xf32>
    %153 = vector.broadcast %152 : vector<1x32xf32> to vector<16x32xf32>
    %154 = arith.addf %150, %153 : vector<16x32xf32>
    %155 = arith.addf %98, %154 : vector<16x32xf32>
    %c0_70 = arith.constant 0 : index
    %c0_71 = arith.constant 0 : index
    %c0_72 = arith.constant 0 : index
    %156 = vector.load %arg15[%c0_70, %c0_71, %c0_72] : memref<2x1x32xf32, #tpu.memory_space<vmem>>, vector<1x1x32xf32>
    %157 = vector.shape_cast %156 : vector<1x1x32xf32> to vector<1x32xf32>
    %c0_73 = arith.constant 0 : index
    %c0_74 = arith.constant 0 : index
    %c0_75 = arith.constant 0 : index
    %158 = vector.load %arg16[%c0_73, %c0_74, %c0_75] : memref<2x1x32xf32, #tpu.memory_space<vmem>>, vector<1x1x32xf32>
    %159 = vector.shape_cast %158 : vector<1x1x32xf32> to vector<1x32xf32>
    %cst_76 = arith.constant dense<0.000000e+00> : vector<16xf32>
    %160 = vector.multi_reduction <add>, %155, %cst_76 [1] : vector<16x32xf32> to vector<16xf32>
    %161 = vector.shape_cast %160 : vector<16xf32> to vector<16x1xf32>
    %cst_77 = arith.constant 3.200000e+01 : f32
    %162 = vector.broadcast %cst_77 : f32 to vector<16x1xf32>
    %163 = arith.divf %161, %162 : vector<16x1xf32>
    %164 = vector.broadcast %163 : vector<16x1xf32> to vector<16x32xf32>
    %165 = arith.subf %155, %164 : vector<16x32xf32>
    %166 = arith.mulf %165, %165 : vector<16x32xf32>
    %cst_78 = arith.constant dense<0.000000e+00> : vector<16xf32>
    %167 = vector.multi_reduction <add>, %166, %cst_78 [1] : vector<16x32xf32> to vector<16xf32>
    %168 = vector.shape_cast %167 : vector<16xf32> to vector<16x1xf32>
    %cst_79 = arith.constant 3.200000e+01 : f32
    %169 = vector.broadcast %cst_79 : f32 to vector<16x1xf32>
    %170 = arith.divf %168, %169 : vector<16x1xf32>
    %cst_80 = arith.constant 9.99999996E-13 : f32
    %171 = vector.broadcast %cst_80 : f32 to vector<16x1xf32>
    %172 = arith.addf %170, %171 : vector<16x1xf32>
    %173 = math.rsqrt %172 : vector<16x1xf32>
    %174 = vector.broadcast %173 : vector<16x1xf32> to vector<16x32xf32>
    %175 = arith.mulf %165, %174 : vector<16x32xf32>
    %176 = vector.broadcast %157 : vector<1x32xf32> to vector<16x32xf32>
    %177 = arith.mulf %175, %176 : vector<16x32xf32>
    %178 = vector.broadcast %159 : vector<1x32xf32> to vector<16x32xf32>
    %179 = arith.addf %177, %178 : vector<16x32xf32>
    %c1 = arith.constant 1 : index
    %c0_81 = arith.constant 0 : index
    %c0_82 = arith.constant 0 : index
    %180 = vector.load %arg5[%c1, %c0_81, %c0_82] : memref<2x32x96xbf16, #tpu.memory_space<vmem>>, vector<1x32x96xbf16>
    %181 = vector.shape_cast %180 : vector<1x32x96xbf16> to vector<32x96xbf16>
    %182 = arith.truncf %179 : vector<16x32xf32> to vector<16x32xbf16>
    %cst_83 = arith.constant dense<0.000000e+00> : vector<16x96xf32>
    %183 = tpu.matmul %182, %181, %cst_83 {dimension_numbers = #tpu.dot_dimension_numbers<[1], [0], [0], [1], [0, 0, 1, 1], [], []>} : vector<16x32xbf16>, vector<32x96xbf16>, vector<16x96xf32> -> vector<16x96xf32>
    %c1_84 = arith.constant 1 : index
    %c0_85 = arith.constant 0 : index
    %c0_86 = arith.constant 0 : index
    %184 = vector.load %arg6[%c1_84, %c0_85, %c0_86] : memref<2x1x96xf32, #tpu.memory_space<vmem>>, vector<1x1x96xf32>
    %185 = vector.shape_cast %184 : vector<1x1x96xf32> to vector<1x96xf32>
    %186 = vector.broadcast %185 : vector<1x96xf32> to vector<16x96xf32>
    %187 = arith.addf %183, %186 : vector<16x96xf32>
    %188 = vector.extract_strided_slice %187 {offsets = [0, 0], sizes = [16, 32], strides = [1, 1]} : vector<16x96xf32> to vector<16x32xf32>
    %189 = vector.extract_strided_slice %188 {offsets = [0, 0], sizes = [16, 16], strides = [1, 1]} : vector<16x32xf32> to vector<16x16xf32>
    %190 = vector.extract_strided_slice %188 {offsets = [0, 16], sizes = [16, 16], strides = [1, 1]} : vector<16x32xf32> to vector<16x16xf32>
    %191 = tpu.concatenate %189, %190 in 0 : vector<16x16xf32>, vector<16x16xf32> -> vector<32x16xf32>
    %192 = vector.extract_strided_slice %187 {offsets = [0, 32], sizes = [16, 32], strides = [1, 1]} : vector<16x96xf32> to vector<16x32xf32>
    %193 = vector.extract_strided_slice %192 {offsets = [0, 0], sizes = [16, 16], strides = [1, 1]} : vector<16x32xf32> to vector<16x16xf32>
    %194 = vector.extract_strided_slice %192 {offsets = [0, 16], sizes = [16, 16], strides = [1, 1]} : vector<16x32xf32> to vector<16x16xf32>
    %195 = tpu.concatenate %193, %194 in 0 : vector<16x16xf32>, vector<16x16xf32> -> vector<32x16xf32>
    %196 = vector.extract_strided_slice %187 {offsets = [0, 64], sizes = [16, 32], strides = [1, 1]} : vector<16x96xf32> to vector<16x32xf32>
    %197 = vector.extract_strided_slice %196 {offsets = [0, 0], sizes = [16, 16], strides = [1, 1]} : vector<16x32xf32> to vector<16x16xf32>
    %198 = vector.extract_strided_slice %196 {offsets = [0, 16], sizes = [16, 16], strides = [1, 1]} : vector<16x32xf32> to vector<16x16xf32>
    %199 = tpu.concatenate %197, %198 in 0 : vector<16x16xf32>, vector<16x16xf32> -> vector<32x16xf32>
    %200 = arith.truncf %191 : vector<32x16xf32> to vector<32x16xbf16>
    %201 = arith.truncf %195 : vector<32x16xf32> to vector<32x16xbf16>
    %cst_87 = arith.constant dense<0.000000e+00> : vector<32x32xf32>
    %202 = tpu.matmul %200, %201, %cst_87 {dimension_numbers = #tpu.dot_dimension_numbers<[1], [1], [0], [0], [0, 0, 1, 0], [], []>} : vector<32x16xbf16>, vector<32x16xbf16>, vector<32x32xf32> -> vector<32x32xf32>
    %cst_88 = arith.constant 2.500000e-01 : f32
    %203 = vector.broadcast %cst_88 : f32 to vector<32x32xf32>
    %204 = arith.mulf %202, %203 : vector<32x32xf32>
    %205 = arith.addf %204, %23 : vector<32x32xf32>
    %cst_89 = arith.constant dense<0xFF800000> : vector<32xf32>
    %206 = vector.multi_reduction <maximumf>, %205, %cst_89 [1] : vector<32x32xf32> to vector<32xf32>
    %207 = vector.shape_cast %206 : vector<32xf32> to vector<32x1xf32>
    %208 = vector.broadcast %207 : vector<32x1xf32> to vector<32x32xf32>
    %209 = arith.subf %205, %208 : vector<32x32xf32>
    %210 = math.exp %209 : vector<32x32xf32>
    %cst_90 = arith.constant dense<0.000000e+00> : vector<32xf32>
    %211 = vector.multi_reduction <add>, %210, %cst_90 [1] : vector<32x32xf32> to vector<32xf32>
    %212 = vector.shape_cast %211 : vector<32xf32> to vector<32x1xf32>
    %213 = tpu.reciprocal %212 {approx = true} : vector<32x1xf32> -> vector<32x1xf32>
    %214 = vector.broadcast %213 : vector<32x1xf32> to vector<32x32xf32>
    %215 = arith.mulf %210, %214 : vector<32x32xf32>
    %216 = arith.truncf %215 : vector<32x32xf32> to vector<32x32xbf16>
    %217 = arith.truncf %199 : vector<32x16xf32> to vector<32x16xbf16>
    %cst_91 = arith.constant dense<0.000000e+00> : vector<32x16xf32>
    %218 = tpu.matmul %216, %217, %cst_91 {dimension_numbers = #tpu.dot_dimension_numbers<[1], [0], [0], [1], [0, 0, 1, 1], [], []>} : vector<32x32xbf16>, vector<32x16xbf16>, vector<32x16xf32> -> vector<32x16xf32>
    %219 = vector.extract_strided_slice %218 {offsets = [0, 0], sizes = [16, 16], strides = [1, 1]} : vector<32x16xf32> to vector<16x16xf32>
    %220 = vector.extract_strided_slice %218 {offsets = [16, 0], sizes = [16, 16], strides = [1, 1]} : vector<32x16xf32> to vector<16x16xf32>
    %221 = tpu.concatenate %219, %220 in 1 : vector<16x16xf32>, vector<16x16xf32> -> vector<16x32xf32>
    %c1_92 = arith.constant 1 : index
    %c0_93 = arith.constant 0 : index
    %c0_94 = arith.constant 0 : index
    %222 = vector.load %arg7[%c1_92, %c0_93, %c0_94] : memref<2x32x32xbf16, #tpu.memory_space<vmem>>, vector<1x32x32xbf16>
    %223 = vector.shape_cast %222 : vector<1x32x32xbf16> to vector<32x32xbf16>
    %224 = arith.truncf %221 : vector<16x32xf32> to vector<16x32xbf16>
    %cst_95 = arith.constant dense<0.000000e+00> : vector<16x32xf32>
    %225 = tpu.matmul %224, %223, %cst_95 {dimension_numbers = #tpu.dot_dimension_numbers<[1], [0], [0], [1], [0, 0, 1, 1], [], []>} : vector<16x32xbf16>, vector<32x32xbf16>, vector<16x32xf32> -> vector<16x32xf32>
    %c1_96 = arith.constant 1 : index
    %c0_97 = arith.constant 0 : index
    %c0_98 = arith.constant 0 : index
    %226 = vector.load %arg8[%c1_96, %c0_97, %c0_98] : memref<2x1x32xf32, #tpu.memory_space<vmem>>, vector<1x1x32xf32>
    %227 = vector.shape_cast %226 : vector<1x1x32xf32> to vector<1x32xf32>
    %228 = vector.broadcast %227 : vector<1x32xf32> to vector<16x32xf32>
    %229 = arith.addf %225, %228 : vector<16x32xf32>
    %230 = arith.addf %179, %229 : vector<16x32xf32>
    %c1_99 = arith.constant 1 : index
    %c0_100 = arith.constant 0 : index
    %c0_101 = arith.constant 0 : index
    %231 = vector.load %arg9[%c1_99, %c0_100, %c0_101] : memref<2x1x32xf32, #tpu.memory_space<vmem>>, vector<1x1x32xf32>
    %232 = vector.shape_cast %231 : vector<1x1x32xf32> to vector<1x32xf32>
    %c1_102 = arith.constant 1 : index
    %c0_103 = arith.constant 0 : index
    %c0_104 = arith.constant 0 : index
    %233 = vector.load %arg10[%c1_102, %c0_103, %c0_104] : memref<2x1x32xf32, #tpu.memory_space<vmem>>, vector<1x1x32xf32>
    %234 = vector.shape_cast %233 : vector<1x1x32xf32> to vector<1x32xf32>
    %cst_105 = arith.constant dense<0.000000e+00> : vector<16xf32>
    %235 = vector.multi_reduction <add>, %230, %cst_105 [1] : vector<16x32xf32> to vector<16xf32>
    %236 = vector.shape_cast %235 : vector<16xf32> to vector<16x1xf32>
    %cst_106 = arith.constant 3.200000e+01 : f32
    %237 = vector.broadcast %cst_106 : f32 to vector<16x1xf32>
    %238 = arith.divf %236, %237 : vector<16x1xf32>
    %239 = vector.broadcast %238 : vector<16x1xf32> to vector<16x32xf32>
    %240 = arith.subf %230, %239 : vector<16x32xf32>
    %241 = arith.mulf %240, %240 : vector<16x32xf32>
    %cst_107 = arith.constant dense<0.000000e+00> : vector<16xf32>
    %242 = vector.multi_reduction <add>, %241, %cst_107 [1] : vector<16x32xf32> to vector<16xf32>
    %243 = vector.shape_cast %242 : vector<16xf32> to vector<16x1xf32>
    %cst_108 = arith.constant 3.200000e+01 : f32
    %244 = vector.broadcast %cst_108 : f32 to vector<16x1xf32>
    %245 = arith.divf %243, %244 : vector<16x1xf32>
    %cst_109 = arith.constant 9.99999996E-13 : f32
    %246 = vector.broadcast %cst_109 : f32 to vector<16x1xf32>
    %247 = arith.addf %245, %246 : vector<16x1xf32>
    %248 = math.rsqrt %247 : vector<16x1xf32>
    %249 = vector.broadcast %248 : vector<16x1xf32> to vector<16x32xf32>
    %250 = arith.mulf %240, %249 : vector<16x32xf32>
    %251 = vector.broadcast %232 : vector<1x32xf32> to vector<16x32xf32>
    %252 = arith.mulf %250, %251 : vector<16x32xf32>
    %253 = vector.broadcast %234 : vector<1x32xf32> to vector<16x32xf32>
    %254 = arith.addf %252, %253 : vector<16x32xf32>
    %c1_110 = arith.constant 1 : index
    %c0_111 = arith.constant 0 : index
    %c0_112 = arith.constant 0 : index
    %255 = vector.load %arg11[%c1_110, %c0_111, %c0_112] : memref<2x32x64xbf16, #tpu.memory_space<vmem>>, vector<1x32x64xbf16>
    %256 = vector.shape_cast %255 : vector<1x32x64xbf16> to vector<32x64xbf16>
    %257 = arith.truncf %254 : vector<16x32xf32> to vector<16x32xbf16>
    %cst_113 = arith.constant dense<0.000000e+00> : vector<16x64xf32>
    %258 = tpu.matmul %257, %256, %cst_113 {dimension_numbers = #tpu.dot_dimension_numbers<[1], [0], [0], [1], [0, 0, 1, 1], [], []>} : vector<16x32xbf16>, vector<32x64xbf16>, vector<16x64xf32> -> vector<16x64xf32>
    %c1_114 = arith.constant 1 : index
    %c0_115 = arith.constant 0 : index
    %c0_116 = arith.constant 0 : index
    %259 = vector.load %arg12[%c1_114, %c0_115, %c0_116] : memref<2x1x64xf32, #tpu.memory_space<vmem>>, vector<1x1x64xf32>
    %260 = vector.shape_cast %259 : vector<1x1x64xf32> to vector<1x64xf32>
    %261 = vector.broadcast %260 : vector<1x64xf32> to vector<16x64xf32>
    %262 = arith.addf %258, %261 : vector<16x64xf32>
    %cst_117 = arith.constant 0.707106769 : f32
    %263 = vector.broadcast %cst_117 : f32 to vector<16x64xf32>
    %264 = arith.mulf %262, %263 : vector<16x64xf32>
    %265 = math.absf %264 : vector<16x64xf32>
    %cst_118 = arith.constant 0.327591091 : f32
    %266 = vector.broadcast %cst_118 : f32 to vector<16x64xf32>
    %267 = arith.mulf %266, %265 : vector<16x64xf32>
    %cst_119 = arith.constant 1.000000e+00 : f32
    %268 = vector.broadcast %cst_119 : f32 to vector<16x64xf32>
    %269 = arith.addf %268, %267 : vector<16x64xf32>
    %cst_120 = arith.constant 1.000000e+00 : f32
    %270 = vector.broadcast %cst_120 : f32 to vector<16x64xf32>
    %271 = arith.divf %270, %269 : vector<16x64xf32>
    %cst_121 = arith.constant 1.06140542 : f32
    %272 = vector.broadcast %cst_121 : f32 to vector<16x64xf32>
    %273 = arith.mulf %272, %271 : vector<16x64xf32>
    %cst_122 = arith.constant -1.45315206 : f32
    %274 = vector.broadcast %cst_122 : f32 to vector<16x64xf32>
    %275 = arith.addf %273, %274 : vector<16x64xf32>
    %276 = arith.mulf %275, %271 : vector<16x64xf32>
    %cst_123 = arith.constant 1.42141378 : f32
    %277 = vector.broadcast %cst_123 : f32 to vector<16x64xf32>
    %278 = arith.addf %276, %277 : vector<16x64xf32>
    %279 = arith.mulf %278, %271 : vector<16x64xf32>
    %cst_124 = arith.constant -0.284496725 : f32
    %280 = vector.broadcast %cst_124 : f32 to vector<16x64xf32>
    %281 = arith.addf %279, %280 : vector<16x64xf32>
    %282 = arith.mulf %281, %271 : vector<16x64xf32>
    %cst_125 = arith.constant 0.254829586 : f32
    %283 = vector.broadcast %cst_125 : f32 to vector<16x64xf32>
    %284 = arith.addf %282, %283 : vector<16x64xf32>
    %285 = arith.mulf %284, %271 : vector<16x64xf32>
    %cst_126 = arith.constant 0.000000e+00 : f32
    %286 = vector.broadcast %cst_126 : f32 to vector<16x64xf32>
    %287 = arith.subf %286, %265 : vector<16x64xf32>
    %288 = arith.mulf %287, %265 : vector<16x64xf32>
    %289 = math.exp %288 : vector<16x64xf32>
    %290 = arith.mulf %285, %289 : vector<16x64xf32>
    %cst_127 = arith.constant 1.000000e+00 : f32
    %291 = vector.broadcast %cst_127 : f32 to vector<16x64xf32>
    %292 = arith.subf %291, %290 : vector<16x64xf32>
    %cst_128 = arith.constant 0.000000e+00 : f32
    %293 = vector.broadcast %cst_128 : f32 to vector<16x64xf32>
    %294 = arith.cmpf olt, %264, %293 : vector<16x64xf32>
    %cst_129 = arith.constant 0.000000e+00 : f32
    %295 = vector.broadcast %cst_129 : f32 to vector<16x64xf32>
    %296 = arith.subf %295, %292 : vector<16x64xf32>
    %297 = arith.select %294, %296, %292 : vector<16x64xi1>, vector<16x64xf32>
    %cst_130 = arith.constant 5.000000e-01 : f32
    %298 = vector.broadcast %cst_130 : f32 to vector<16x64xf32>
    %299 = arith.mulf %298, %262 : vector<16x64xf32>
    %cst_131 = arith.constant 1.000000e+00 : f32
    %300 = vector.broadcast %cst_131 : f32 to vector<16x64xf32>
    %301 = arith.addf %300, %297 : vector<16x64xf32>
    %302 = arith.mulf %299, %301 : vector<16x64xf32>
    %c1_132 = arith.constant 1 : index
    %c0_133 = arith.constant 0 : index
    %c0_134 = arith.constant 0 : index
    %303 = vector.load %arg13[%c1_132, %c0_133, %c0_134] : memref<2x64x32xbf16, #tpu.memory_space<vmem>>, vector<1x64x32xbf16>
    %304 = vector.shape_cast %303 : vector<1x64x32xbf16> to vector<64x32xbf16>
    %305 = arith.truncf %302 : vector<16x64xf32> to vector<16x64xbf16>
    %cst_135 = arith.constant dense<0.000000e+00> : vector<16x32xf32>
    %306 = tpu.matmul %305, %304, %cst_135 {dimension_numbers = #tpu.dot_dimension_numbers<[1], [0], [0], [1], [0, 0, 1, 1], [], []>} : vector<16x64xbf16>, vector<64x32xbf16>, vector<16x32xf32> -> vector<16x32xf32>
    %c1_136 = arith.constant 1 : index
    %c0_137 = arith.constant 0 : index
    %c0_138 = arith.constant 0 : index
    %307 = vector.load %arg14[%c1_136, %c0_137, %c0_138] : memref<2x1x32xf32, #tpu.memory_space<vmem>>, vector<1x1x32xf32>
    %308 = vector.shape_cast %307 : vector<1x1x32xf32> to vector<1x32xf32>
    %309 = vector.broadcast %308 : vector<1x32xf32> to vector<16x32xf32>
    %310 = arith.addf %306, %309 : vector<16x32xf32>
    %311 = arith.addf %254, %310 : vector<16x32xf32>
    %c1_139 = arith.constant 1 : index
    %c0_140 = arith.constant 0 : index
    %c0_141 = arith.constant 0 : index
    %312 = vector.load %arg15[%c1_139, %c0_140, %c0_141] : memref<2x1x32xf32, #tpu.memory_space<vmem>>, vector<1x1x32xf32>
    %313 = vector.shape_cast %312 : vector<1x1x32xf32> to vector<1x32xf32>
    %c1_142 = arith.constant 1 : index
    %c0_143 = arith.constant 0 : index
    %c0_144 = arith.constant 0 : index
    %314 = vector.load %arg16[%c1_142, %c0_143, %c0_144] : memref<2x1x32xf32, #tpu.memory_space<vmem>>, vector<1x1x32xf32>
    %315 = vector.shape_cast %314 : vector<1x1x32xf32> to vector<1x32xf32>
    %cst_145 = arith.constant dense<0.000000e+00> : vector<16xf32>
    %316 = vector.multi_reduction <add>, %311, %cst_145 [1] : vector<16x32xf32> to vector<16xf32>
    %317 = vector.shape_cast %316 : vector<16xf32> to vector<16x1xf32>
    %cst_146 = arith.constant 3.200000e+01 : f32
    %318 = vector.broadcast %cst_146 : f32 to vector<16x1xf32>
    %319 = arith.divf %317, %318 : vector<16x1xf32>
    %320 = vector.broadcast %319 : vector<16x1xf32> to vector<16x32xf32>
    %321 = arith.subf %311, %320 : vector<16x32xf32>
    %322 = arith.mulf %321, %321 : vector<16x32xf32>
    %cst_147 = arith.constant dense<0.000000e+00> : vector<16xf32>
    %323 = vector.multi_reduction <add>, %322, %cst_147 [1] : vector<16x32xf32> to vector<16xf32>
    %324 = vector.shape_cast %323 : vector<16xf32> to vector<16x1xf32>
    %cst_148 = arith.constant 3.200000e+01 : f32
    %325 = vector.broadcast %cst_148 : f32 to vector<16x1xf32>
    %326 = arith.divf %324, %325 : vector<16x1xf32>
    %cst_149 = arith.constant 9.99999996E-13 : f32
    %327 = vector.broadcast %cst_149 : f32 to vector<16x1xf32>
    %328 = arith.addf %326, %327 : vector<16x1xf32>
    %329 = math.rsqrt %328 : vector<16x1xf32>
    %330 = vector.broadcast %329 : vector<16x1xf32> to vector<16x32xf32>
    %331 = arith.mulf %321, %330 : vector<16x32xf32>
    %332 = vector.broadcast %313 : vector<1x32xf32> to vector<16x32xf32>
    %333 = arith.mulf %331, %332 : vector<16x32xf32>
    %334 = vector.broadcast %315 : vector<1x32xf32> to vector<16x32xf32>
    %335 = arith.addf %333, %334 : vector<16x32xf32>
    %336 = vector.extract_strided_slice %335 {offsets = [0, 0], sizes = [1, 32], strides = [1, 1]} : vector<16x32xf32> to vector<1x32xf32>
    %337 = vector.extract_strided_slice %335 {offsets = [8, 0], sizes = [1, 32], strides = [1, 1]} : vector<16x32xf32> to vector<1x32xf32>
    %338 = tpu.concatenate %336, %337 in 0 : vector<1x32xf32>, vector<1x32xf32> -> vector<2x32xf32>
    %c0_150 = arith.constant 0 : index
    %c0_151 = arith.constant 0 : index
    %339 = vector.load %arg17[%c0_150, %c0_151] : memref<2x32xf32, #tpu.memory_space<vmem>>, vector<2x32xf32>
    tpu.vector_store %arg17[%c0_150, %c0_151], %338 {strides = array<i32>} : memref<2x32xf32, #tpu.memory_space<vmem>>, vector<2x32xf32>,
    return
  }
  func.func @transform_0(%arg0: i32) -> (i32, i32) {
    %c0_i32 = arith.constant 0 : i32
    %c0_i32_0 = arith.constant 0 : i32
    %c0_i32_1 = arith.constant 0 : i32
    return %c0_i32, %c0_i32_0 : i32, i32
  }
  func.func @transform_1(%arg0: i32) -> (i32, i32) {
    %c0_i32 = arith.constant 0 : i32
    %c0_i32_0 = arith.constant 0 : i32
    %c0_i32_1 = arith.constant 0 : i32
    return %c0_i32, %c0_i32_0 : i32, i32
  }
  func.func @transform_2(%arg0: i32) -> (i32, i32) {
    %c0_i32 = arith.constant 0 : i32
    %c0_i32_0 = arith.constant 0 : i32
    %c0_i32_1 = arith.constant 0 : i32
    return %c0_i32, %c0_i32_0 : i32, i32
  }
  func.func @transform_3(%arg0: i32) -> (i32, i32) {
    %c0_i32 = arith.constant 0 : i32
    %c0_i32_0 = arith.constant 0 : i32
    %c0_i32_1 = arith.constant 0 : i32
    return %c0_i32, %c0_i32_0 : i32, i32
  }
  func.func @transform_4(%arg0: i32) -> (i32, i32, i32) {
    %c0_i32 = arith.constant 0 : i32
    %c0_i32_0 = arith.constant 0 : i32
    %c0_i32_1 = arith.constant 0 : i32
    %c0_i32_2 = arith.constant 0 : i32
    return %c0_i32, %c0_i32_0, %c0_i32_1 : i32, i32, i32
  }
  func.func @transform_5(%arg0: i32) -> (i32, i32, i32) {
    %c0_i32 = arith.constant 0 : i32
    %c0_i32_0 = arith.constant 0 : i32
    %c0_i32_1 = arith.constant 0 : i32
    %c0_i32_2 = arith.constant 0 : i32
    return %c0_i32, %c0_i32_0, %c0_i32_1 : i32, i32, i32
  }
  func.func @transform_6(%arg0: i32) -> (i32, i32, i32) {
    %c0_i32 = arith.constant 0 : i32
    %c0_i32_0 = arith.constant 0 : i32
    %c0_i32_1 = arith.constant 0 : i32
    %c0_i32_2 = arith.constant 0 : i32
    return %c0_i32, %c0_i32_0, %c0_i32_1 : i32, i32, i32
  }
  func.func @transform_7(%arg0: i32) -> (i32, i32, i32) {
    %c0_i32 = arith.constant 0 : i32
    %c0_i32_0 = arith.constant 0 : i32
    %c0_i32_1 = arith.constant 0 : i32
    %c0_i32_2 = arith.constant 0 : i32
    return %c0_i32, %c0_i32_0, %c0_i32_1 : i32, i32, i32
  }
  func.func @transform_8(%arg0: i32) -> (i32, i32, i32) {
    %c0_i32 = arith.constant 0 : i32
    %c0_i32_0 = arith.constant 0 : i32
    %c0_i32_1 = arith.constant 0 : i32
    %c0_i32_2 = arith.constant 0 : i32
    return %c0_i32, %c0_i32_0, %c0_i32_1 : i32, i32, i32
  }
  func.func @transform_9(%arg0: i32) -> (i32, i32, i32) {
    %c0_i32 = arith.constant 0 : i32
    %c0_i32_0 = arith.constant 0 : i32
    %c0_i32_1 = arith.constant 0 : i32
    %c0_i32_2 = arith.constant 0 : i32
    return %c0_i32, %c0_i32_0, %c0_i32_1 : i32, i32, i32
  }
  func.func @transform_10(%arg0: i32) -> (i32, i32, i32) {
    %c0_i32 = arith.constant 0 : i32
    %c0_i32_0 = arith.constant 0 : i32
    %c0_i32_1 = arith.constant 0 : i32
    %c0_i32_2 = arith.constant 0 : i32
    return %c0_i32, %c0_i32_0, %c0_i32_1 : i32, i32, i32
  }
  func.func @transform_11(%arg0: i32) -> (i32, i32, i32) {
    %c0_i32 = arith.constant 0 : i32
    %c0_i32_0 = arith.constant 0 : i32
    %c0_i32_1 = arith.constant 0 : i32
    %c0_i32_2 = arith.constant 0 : i32
    return %c0_i32, %c0_i32_0, %c0_i32_1 : i32, i32, i32
  }
  func.func @transform_12(%arg0: i32) -> (i32, i32, i32) {
    %c0_i32 = arith.constant 0 : i32
    %c0_i32_0 = arith.constant 0 : i32
    %c0_i32_1 = arith.constant 0 : i32
    %c0_i32_2 = arith.constant 0 : i32
    return %c0_i32, %c0_i32_0, %c0_i32_1 : i32, i32, i32
  }
  func.func @transform_13(%arg0: i32) -> (i32, i32, i32) {
    %c0_i32 = arith.constant 0 : i32
    %c0_i32_0 = arith.constant 0 : i32
    %c0_i32_1 = arith.constant 0 : i32
    %c0_i32_2 = arith.constant 0 : i32
    return %c0_i32, %c0_i32_0, %c0_i32_1 : i32, i32, i32
  }
  func.func @transform_14(%arg0: i32) -> (i32, i32, i32) {
    %c0_i32 = arith.constant 0 : i32
    %c0_i32_0 = arith.constant 0 : i32
    %c0_i32_1 = arith.constant 0 : i32
    %c0_i32_2 = arith.constant 0 : i32
    return %c0_i32, %c0_i32_0, %c0_i32_1 : i32, i32, i32
  }
  func.func @transform_15(%arg0: i32) -> (i32, i32, i32) {
    %c0_i32 = arith.constant 0 : i32
    %c0_i32_0 = arith.constant 0 : i32
    %c0_i32_1 = arith.constant 0 : i32
    %c0_i32_2 = arith.constant 0 : i32
    return %c0_i32, %c0_i32_0, %c0_i32_1 : i32, i32, i32
  }
  func.func @transform_16(%arg0: i32) -> (i32, i32) {
    %c0_i32 = arith.constant 0 : i32
    %c0_i32_0 = arith.constant 0 : i32
    %c0_i32_1 = arith.constant 0 : i32
    return %c0_i32, %c0_i32_0 : i32, i32
  }
}

</mosaic_0001>

<llo_original>
// kernel: tile.5
$region0: #{tile.5}
  %s0 = inlined_call_operand.vmem [shape: f32[2,8], index: 0, kind: input, shape index: {}]
  %s1 = inlined_call_operand.vmem [shape: f32[16], index: 1, kind: output, shape index: {}]
  $region1: #{tile.5} parent=0
    #allocation0 [shape = 'u8[4096]{0}', space=vmem, size = 0x1000, scoped, tag = 'scoped mem for output reshape']
    #allocation1 [shape = 'u8[4096]{0}', space=vmem, size = 0x1000, scoped, tag = 'scoped mem for input reshape']
    %s3 = sshll.u32 1, 2
    %s4 = ssub.s32 %s3, 1
    %v5 = vld [vmem:[%s0] sm:%s4]
    %6 = vst [vmem:[#allocation1] sm:%s4] %v5
    %v7 = vld [vmem:[#allocation1] sm:$0x1]
    %vm8 = vcmask 64512
    %9 = vst.msk [vmem:[#allocation0] sm:$0x1] %vm8, %v7
    %s10 = scalar_lea.vmem [#allocation1], 1
    %v11 = vld [vmem:[%s10] sm:$0x1]
    %12 = vrot.lane.b32.xlu0 %v11, 8
    %v13 = vpop.permute.xlu0 %12
    %vm14 = vcmask 130112
    %15 = vst.msk [vmem:[#allocation0] sm:$0x1] %vm14, %v13
    %s17 = sshll.u32 1, 1
    %s18 = ssub.s32 %s17, 1
    %v20 = vld [vmem:[#allocation0] sm:%s18]
    %s21 = sshll.u32 1, 1
    %s22 = ssub.s32 %s21, 1
    %23 = vst [vmem:[%s1] sm:%s22] %v20

// kernel: tile.6
$region0: #{tile.6}
  #allocation0 [shape = 's32[1]{0}', space=sflag, size = 0x4, scoped, tag = 'scoped memory for tile.6']
  %s0 = inlined_call_operand.vmem [shape: f32[16], index: 0, kind: input, shape index: {}]
  %s1 = inlined_call_operand.vmem [shape: f32[2,16], index: 1, kind: output, shape index: {}]
  // Predicated region
  $region2: #{tile.6} parent=0 // pred_check
    _
  $region3: #{tile.6} parent=0 // pred_check_branch
    %3 = sbr.rel (0) target = $region5
  $region4: #{tile.6} parent=0 // pred_region
    _
  $region5: #{tile.6} parent=0 // pred_fallthru
    _
  %v4 = vld [vmem:[%s0] ss:$0 sm:$0xff]
  %5 = vst [vmem:[%s1] sm:$0x3] %v4

// kernel: eq.8
$region0: #{eq.8}
  %s0 = inlined_call_operand.vmem [shape: s32[4,8], index: 0, kind: input, shape index: {}]
  %s1 = inlined_call_operand.vmem [shape: s32[32], index: 1, kind: output, shape index: {}]
  $region1: #{eq.8} parent=0
    #allocation0 [shape = 'u8[4096]{0}', space=vmem, size = 0x1000, scoped, tag = 'scoped mem for output reshape']
    #allocation1 [shape = 'u8[4096]{0}', space=vmem, size = 0x1000, scoped, tag = 'scoped mem for input reshape']
    %s3 = sshll.u32 1, 4
    %s4 = ssub.s32 %s3, 1
    %v5 = vld [vmem:[%s0] sm:%s4]
    %6 = vst [vmem:[#allocation1] sm:%s4] %v5
    %v7 = vld [vmem:[#allocation1] sm:$0x1]
    %vm8 = vcmask 64512
    %9 = vst.msk [vmem:[#allocation0] sm:$0x1] %vm8, %v7
    %s10 = scalar_lea.vmem [#allocation1], 3
    %v11 = vld [vmem:[%s10] sm:$0x1]
    %12 = vrot.lane.b32.xlu0 %v11, 24
    %v13 = vpop.permute.xlu0 %12
    %vm14 = vcmask 261312
    %15 = vst.msk [vmem:[#allocation0] sm:$0x1] %vm14, %v13
    %s16 = scalar_lea.vmem [#allocation1], 2
    %v17 = vld [vmem:[%s16] sm:$0x1]
    %18 = vrot.lane.b32.xlu0 %v17, 16
    %v19 = vpop.permute.xlu0 %18
    %vm20 = vcmask 195712
    %21 = vst.msk [vmem:[#allocation0] sm:$0x1] %vm20, %v19
    %s22 = scalar_lea.vmem [#allocation1], 1
    %v23 = vld [vmem:[%s22] sm:$0x1]
    %24 = vrot.lane.b32.xlu0 %v23, 8
    %v25 = vpop.permute.xlu0 %24
    %vm26 = vcmask 130112
    %27 = vst.msk [vmem:[#allocation0] sm:$0x1] %vm26, %v25
    %s29 = sshll.u32 1, 1
    %s30 = ssub.s32 %s29, 1
    %v32 = vld [vmem:[#allocation0] sm:%s30]
    %s33 = sshll.u32 1, 1
    %s34 = ssub.s32 %s33, 1
    %35 = vst [vmem:[%s1] sm:%s34] %v32

// kernel: bert_text_encoder_forward.1
$region0: #{bert_text_encoder_forward.1}
  #allocation0 [shape = 'u32[]', space=smem, size = 0x4, offset = 0x4, fixed_abs, tag = 'smem constant byte address 0x4 - core index']
  #allocation1 [shape = 'u32[144,128]{1,0:T(1,128)}', space=vmem, size = 0x12000, scoped, tag = 'internal scratch']
  %s0 = inlined_call_operand.vmem [shape: f32[16,32], index: 0, kind: input, shape index: {}]
  %s1 = inlined_call_operand.vmem [shape: f32[32,32], index: 1, kind: input, shape index: {}]
  %s2 = inlined_call_operand.vmem [shape: f32[1,32], index: 2, kind: input, shape index: {}]
  %s3 = inlined_call_operand.vmem [shape: f32[1,32], index: 3, kind: input, shape index: {}]
  %s4 = inlined_call_operand.vmem [shape: bf16[2,32,96], index: 4, kind: input, shape index: {}]
  %s5 = inlined_call_operand.vmem [shape: f32[2,1,96], index: 5, kind: input, shape index: {}]
  %s6 = inlined_call_operand.vmem [shape: bf16[2,32,32], index: 6, kind: input, shape index: {}]
  %s7 = inlined_call_operand.vmem [shape: f32[2,1,32], index: 7, kind: input, shape index: {}]
  %s8 = inlined_call_operand.vmem [shape: f32[2,1,32], index: 8, kind: input, shape index: {}]
  %s9 = inlined_call_operand.vmem [shape: f32[2,1,32], index: 9, kind: input, shape index: {}]
  %s10 = inlined_call_operand.vmem [shape: bf16[2,32,64], index: 10, kind: input, shape index: {}]
  %s11 = inlined_call_operand.vmem [shape: f32[2,1,64], index: 11, kind: input, shape index: {}]
  %s12 = inlined_call_operand.vmem [shape: bf16[2,64,32], index: 12, kind: input, shape index: {}]
  %s13 = inlined_call_operand.vmem [shape: f32[2,1,32], index: 13, kind: input, shape index: {}]
  %s14 = inlined_call_operand.vmem [shape: f32[2,1,32], index: 14, kind: input, shape index: {}]
  %s15 = inlined_call_operand.vmem [shape: f32[2,1,32], index: 15, kind: input, shape index: {}]
  %s16 = inlined_call_operand.hbm [shape: f32[2,32], index: 16, kind: output, shape index: {}]
  %s17 = sld [smem:[#allocation0]]
  $region74: #{bert_text_encoder_forward.1} parent=0
    _
  %s19 = ssub.s32 1, %s17
  %s20 = scalar_select 0, %s19, %s17
  $region1: #{bert_text_encoder_forward.1} parent=0
    #allocation2 [shape = 'u8[1024]{0}', space=vmem, size = 0x400, scoped, tag = 'output window, operand 0, single buffered']
    #allocation3 [shape = 's32[1]{0}', space=sflag, size = 0x4, scoped, tag = 'scoped memory for bert_text_encoder_forward.1']
    %21 = vsyncpa [#allocation3], 0
    // Predicated region
    $region2: #{bert_text_encoder_forward.1} parent=1 // pred_check
      _
    $region3: #{bert_text_encoder_forward.1} parent=1 // pred_check_branch
      %23 = sbr.rel (0) target = $region5
    $region4: #{bert_text_encoder_forward.1} parent=1 // pred_region
      _
    $region5: #{bert_text_encoder_forward.1} parent=1 // pred_fallthru
      _
    // Predicated region
    $region6: #{bert_text_encoder_forward.1} parent=1 // pred_check
      _
    $region7: #{bert_text_encoder_forward.1} parent=1 // pred_check_branch
      %25 = sbr.rel (0) target = $region9
    $region8: #{bert_text_encoder_forward.1} parent=1 // pred_region
      _
    $region9: #{bert_text_encoder_forward.1} parent=1 // pred_fallthru
      _
    // Predicated region
    $region10: #{bert_text_encoder_forward.1} parent=1 // pred_check
      _
    $region11: #{bert_text_encoder_forward.1} parent=1 // pred_check_branch
      %27 = sbr.rel (0) target = $region13
    $region12: #{bert_text_encoder_forward.1} parent=1 // pred_region
      _
    $region13: #{bert_text_encoder_forward.1} parent=1 // pred_fallthru
      _
    // Predicated region
    $region14: #{bert_text_encoder_forward.1} parent=1 // pred_check
      _
    $region15: #{bert_text_encoder_forward.1} parent=1 // pred_check_branch
      %29 = sbr.rel (0) target = $region17
    $region16: #{bert_text_encoder_forward.1} parent=1 // pred_region
      _
    $region17: #{bert_text_encoder_forward.1} parent=1 // pred_fallthru
      _
    // Predicated region
    $region18: #{bert_text_encoder_forward.1} parent=1 // pred_check
      _
    $region19: #{bert_text_encoder_forward.1} parent=1 // pred_check_branch
      %31 = sbr.rel (0) target = $region21
    $region20: #{bert_text_encoder_forward.1} parent=1 // pred_region
      _
    $region21: #{bert_text_encoder_forward.1} parent=1 // pred_fallthru
      _
    // Predicated region
    $region22: #{bert_text_encoder_forward.1} parent=1 // pred_check
      _
    $region23: #{bert_text_encoder_forward.1} parent=1 // pred_check_branch
      %33 = sbr.rel (0) target = $region25
    $region24: #{bert_text_encoder_forward.1} parent=1 // pred_region
      _
    $region25: #{bert_text_encoder_forward.1} parent=1 // pred_fallthru
      _
    // Predicated region
    $region26: #{bert_text_encoder_forward.1} parent=1 // pred_check
      _
    $region27: #{bert_text_encoder_forward.1} parent=1 // pred_check_branch
      %35 = sbr.rel (0) target = $region29
    $region28: #{bert_text_encoder_forward.1} parent=1 // pred_region
      _
    $region29: #{bert_text_encoder_forward.1} parent=1 // pred_fallthru
      _
    // Predicated region
    $region30: #{bert_text_encoder_forward.1} parent=1 // pred_check
      _
    $region31: #{bert_text_encoder_forward.1} parent=1 // pred_check_branch
      %37 = sbr.rel (0) target = $region33
    $region32: #{bert_text_encoder_forward.1} parent=1 // pred_region
      _
    $region33: #{bert_text_encoder_forward.1} parent=1 // pred_fallthru
      _
    // Predicated region
    $region34: #{bert_text_encoder_forward.1} parent=1 // pred_check
      _
    $region35: #{bert_text_encoder_forward.1} parent=1 // pred_check_branch
      %39 = sbr.rel (0) target = $region37
    $region36: #{bert_text_encoder_forward.1} parent=1 // pred_region
      _
    $region37: #{bert_text_encoder_forward.1} parent=1 // pred_fallthru
      _
    // Predicated region
    $region38: #{bert_text_encoder_forward.1} parent=1 // pred_check
      _
    $region39: #{bert_text_encoder_forward.1} parent=1 // pred_check_branch
      %41 = sbr.rel (0) target = $region41
    $region40: #{bert_text_encoder_forward.1} parent=1 // pred_region
      _
    $region41: #{bert_text_encoder_forward.1} parent=1 // pred_fallthru
      _
    // Predicated region
    $region42: #{bert_text_encoder_forward.1} parent=1 // pred_check
      _
    $region43: #{bert_text_encoder_forward.1} parent=1 // pred_check_branch
      %43 = sbr.rel (0) target = $region45
    $region44: #{bert_text_encoder_forward.1} parent=1 // pred_region
      _
    $region45: #{bert_text_encoder_forward.1} parent=1 // pred_fallthru
      _
    // Predicated region
    $region46: #{bert_text_encoder_forward.1} parent=1 // pred_check
      _
    $region47: #{bert_text_encoder_forward.1} parent=1 // pred_check_branch
      %45 = sbr.rel (0) target = $region49
    $region48: #{bert_text_encoder_forward.1} parent=1 // pred_region
      _
    $region49: #{bert_text_encoder_forward.1} parent=1 // pred_fallthru
      _
    // Predicated region
    $region50: #{bert_text_encoder_forward.1} parent=1 // pred_check
      _
    $region51: #{bert_text_encoder_forward.1} parent=1 // pred_check_branch
      %47 = sbr.rel (0) target = $region53
    $region52: #{bert_text_encoder_forward.1} parent=1 // pred_region
      _
    $region53: #{bert_text_encoder_forward.1} parent=1 // pred_fallthru
      _
    // Predicated region
    $region54: #{bert_text_encoder_forward.1} parent=1 // pred_check
      _
    $region55: #{bert_text_encoder_forward.1} parent=1 // pred_check_branch
      %49 = sbr.rel (0) target = $region57
    $region56: #{bert_text_encoder_forward.1} parent=1 // pred_region
      _
    $region57: #{bert_text_encoder_forward.1} parent=1 // pred_fallthru
      _
    // Predicated region
    $region58: #{bert_text_encoder_forward.1} parent=1 // pred_check
      _
    $region59: #{bert_text_encoder_forward.1} parent=1 // pred_check_branch
      %51 = sbr.rel (0) target = $region61
    $region60: #{bert_text_encoder_forward.1} parent=1 // pred_region
      _
    $region61: #{bert_text_encoder_forward.1} parent=1 // pred_fallthru
      _
    // Predicated region
    $region62: #{bert_text_encoder_forward.1} parent=1 // pred_check
      _
    $region63: #{bert_text_encoder_forward.1} parent=1 // pred_check_branch
      %53 = sbr.rel (0) target = $region65
    $region64: #{bert_text_encoder_forward.1} parent=1 // pred_region
      _
    $region65: #{bert_text_encoder_forward.1} parent=1 // pred_fallthru
      _
    %v55 = vld [vmem:[%s0] sm:$0xff]
    %v56 = vld [vmem:[%s0 + $0x8] sm:$0xff]
    %v57 = vld [vmem:[%s2] sm:$0x1]
    %v58 = vld [vmem:[%s3] sm:$0x1]
    %vm59 = vcmask 261120
    %v60 = vsel %vm59, %v55, 0.0
    %61 = vadd.xlane.f32.xlu0 %v60
    %v62 = vpop.xlane.xlu0 %61
    %v63 = vsel %vm59, %v56, 0.0
    %64 = vadd.xlane.f32.xlu0 %v63
    %v65 = vpop.xlane.xlu0 %64
    %v66 = vrcp.pop 32.0
    %v67 = vmul.f32 %v62, %v66
    %v68 = vmul.f32 %v65, %v66
    %v69 = vsub.f32 %v55, %v67
    %v70 = vsub.f32 %v56, %v68
    %v71 = vmul.f32 %v69, %v69
    %v72 = vmul.f32 %v70, %v70
    %v73 = vsel %vm59, %v71, 0.0
    %74 = vadd.xlane.f32.xlu0 %v73
    %v75 = vpop.xlane.xlu0 %74
    %v76 = vsel %vm59, %v72, 0.0
    %77 = vadd.xlane.f32.xlu0 %v76
    %v78 = vpop.xlane.xlu0 %77
    %v79 = vmul.f32 %v75, %v66
    %v80 = vmul.f32 %v78, %v66
    %v81 = vadd.f32 %v79, 1e-12
    %v82 = vadd.f32 %v80, 1e-12
    %v83 = vrsqrt.pop %v81
    %v84 = vrsqrt.pop %v82
    %v85 = vmul.f32 %v69, %v83
    %v86 = vmul.f32 %v70, %v84
    %v88 = vlaneseq
    %v89 = vshrl.u32 %v88, 7
    %v90 = vsub.s32 0, %v89
    %v91 = vrot.slane %v57, %v90
    %v93 = vmul.f32 %v85, %v91
    %v94 = vmul.f32 %v86, %v91
    %v96 = vlaneseq
    %v97 = vshrl.u32 %v96, 7
    %v98 = vsub.s32 0, %v97
    %v99 = vrot.slane %v58, %v98
    %v101 = vadd.f32 %v93, %v99
    %v102 = vadd.f32 %v94, %v99
    %v103 = vld [vmem:[%s1] sm:$0xff]
    %v104 = vld [vmem:[%s1 + $0x8] sm:$0xff]
    %v105 = vld [vmem:[%s1 + $0x10] sm:$0xff]
    %v106 = vld [vmem:[%s1 + $0x18] sm:$0xff]
    %v107 = vld [vmem:[%s4] sm:$0xf]
    %v108 = vld [vmem:[%s4 + $0x4] sm:$0xf]
    %v109 = vld [vmem:[%s4 + $0x8] sm:$0xf]
    %v110 = vld [vmem:[%s4 + $0xc] sm:$0xf]
    %v111 = vpack.c.bf16 %v102, %v101
    %v112 = vld [vmem:[%s5] sm:$0x1]
    %v114 = vlaneseq
    %v115 = vshrl.u32 %v114, 7
    %v116 = vsub.s32 0, %v115
    %v117 = vrot.slane %v112, %v116
    %v123 = vunpack.c.l.b16 %v107
    %v124 = vunpack.c.l.b16 %v108
    %v125 = vunpack.c.l.b16 %v109
    %v126 = vunpack.c.l.b16 %v110
    %v127 = vpack.c.b16 %v124, %v123
    %v128 = vpack.c.b16 %v126, %v125
    %v132 = vsel %vm59, %v111, 0
    %134 = vmatprep.subr.bf16.mxu0 0
    %135 = vmatpush1.bf16.msra.mxu0 0
    %136 = vmatprep.subr.bf16.mxu0 0
    %137 = vmatpush1.bf16.msra.mxu0 0
    %138 = vmatprep.subr.bf16.mxu0 0
    %139 = vmatpush1.bf16.msra.mxu0 0
    %140 = vmatprep.subr.bf16.mxu0 0
    %141 = vmatpush1.bf16.msra.mxu0 0
    %142 = vmatprep.subr.bf16.mxu0 0
    %143 = vmatpush1.bf16.msra.mxu0 0
    %144 = vmatprep.subr.bf16.mxu0 0
    %145 = vmatpush1.bf16.msra.mxu0 0
    %146 = vmatprep.subr.bf16.mxu0 0
    %147 = vmatpush1.bf16.msra.mxu0 %v128
    %148 = vmatprep.subr.bf16.mxu0 0
    %149 = vmatpush1.bf16.msra.mxu0 %v127
    %150 = vmatprep.subr.bf16.mxu0 0
    %151 = vmatpush2.bf16.msra.mxu0 0
    %152 = vmatprep.subr.bf16.mxu0 0
    %153 = vmatpush2.bf16.msra.mxu0 0
    %154 = vmatprep.subr.bf16.mxu0 0
    %155 = vmatpush2.bf16.msra.mxu0 0
    %156 = vmatprep.subr.bf16.mxu0 0
    %157 = vmatpush2.bf16.msra.mxu0 0
    %158 = vmatprep.subr.bf16.mxu0 0
    %159 = vmatpush2.bf16.msra.mxu0 0
    %160 = vmatprep.subr.bf16.mxu0 0
    %161 = vmatpush2.bf16.msra.mxu0 0
    %162 = vmatprep.subr.bf16.mxu0 0
    %163 = vmatpush2.bf16.msra.mxu0 0
    %164 = vmatprep.subr.bf16.mxu0 0
    %165 = vmatpush2.bf16.msra.mxu0 0
    %166 = vmatprep.mubr.bf16.mxu0 0
    %167 = vmatmul.mubr.bf16.gmra.mxu0 %v132
    %v168 = vpop.f32.mrf.mxu0
    %v169 = vadd.f32 %v117, %v168
    %v170 = vpop.f32.mrf.mxu0
    %v171 = vpop.f32.mrf.mxu0
    %v172 = vadd.f32 %v117, %v171
    %v173 = vpop.f32.mrf.mxu0
    %174 = vdwg.mxu0
    %177 = vrot.lane.b32.xlu0 %v169, 112
    %v178 = vpop.permute.xlu0 %177
    %179 = vrot.lane.b32.xlu0 %v172, 112
    %v180 = vpop.permute.xlu0 %179
    %v183 = vpack.c.bf16 %v172, %v169
    %v184 = vpack.c.bf16 %v180, %v178
    %187 = vrot.lane.b32.xlu0 %v183, 96
    %v188 = vpop.permute.xlu0 %187
    %189 = vrot.lane.b32.xlu0 %v184, 96
    %v190 = vpop.permute.xlu0 %189
    %vm191 = vcmask 130048
    %v193 = vsel %vm191, %v183, 0
    %v196 = vsel %vm191, %v184, 0
    %v199 = vsel %vm191, %v188, 0
    %v202 = vsel %vm191, %v190, 0
    %204 = vmatprep.subr.bf16.mxu0 0
    %205 = vmatpush1.bf16.xpose.msra.mxu0 0
    %206 = vmatprep.subr.bf16.mxu0 0
    %207 = vmatpush1.bf16.xpose.msra.mxu0 0
    %208 = vmatprep.subr.bf16.mxu0 0
    %209 = vmatpush1.bf16.xpose.msra.mxu0 0
    %210 = vmatprep.subr.bf16.mxu0 0
    %211 = vmatpush1.bf16.xpose.msra.mxu0 0
    %212 = vmatprep.subr.bf16.mxu0 0
    %213 = vmatpush1.bf16.xpose.msra.mxu0 0
    %214 = vmatprep.subr.bf16.mxu0 0
    %215 = vmatpush1.bf16.xpose.msra.mxu0 0
    %216 = vmatprep.subr.bf16.mxu0 0
    %217 = vmatpush1.bf16.xpose.msra.mxu0 %v202
    %218 = vmatprep.subr.bf16.mxu0 0
    %219 = vmatpush1.bf16.xpose.msra.mxu0 %v199
    %220 = vmatprep.subr.bf16.mxu0 0
    %221 = vmatpush2.bf16.xpose.msra.mxu0 0
    %222 = vmatprep.subr.bf16.mxu0 0
    %223 = vmatpush2.bf16.xpose.msra.mxu0 0
    %224 = vmatprep.subr.bf16.mxu0 0
    %225 = vmatpush2.bf16.xpose.msra.mxu0 0
    %226 = vmatprep.subr.bf16.mxu0 0
    %227 = vmatpush2.bf16.xpose.msra.mxu0 0
    %228 = vmatprep.subr.bf16.mxu0 0
    %229 = vmatpush2.bf16.xpose.msra.mxu0 0
    %230 = vmatprep.subr.bf16.mxu0 0
    %231 = vmatpush2.bf16.xpose.msra.mxu0 0
    %232 = vmatprep.subr.bf16.mxu0 0
    %233 = vmatpush2.bf16.xpose.msra.mxu0 0
    %234 = vmatprep.subr.bf16.mxu0 0
    %235 = vmatpush2.bf16.xpose.msra.mxu0 0
    %236 = vmatprep.mubr.bf16.mxu0 0
    %237 = vmatmul.mubr.bf16.gmra.mxu0 %v193
    %v238 = vpop.f32.mrf.mxu0
    %v239 = vadd.f32 0.0, %v238
    %v240 = vpop.f32.mrf.mxu0
    %v241 = vpop.f32.mrf.mxu0
    %v242 = vadd.f32 0.0, %v241
    %v243 = vpop.f32.mrf.mxu0
    %244 = vmatprep.mubr.bf16.mxu0 0
    %245 = vmatmul.mubr.bf16.gmra.mxu0 %v196
    %v246 = vpop.f32.mrf.mxu0
    %v247 = vadd.f32 0.0, %v246
    %v248 = vpop.f32.mrf.mxu0
    %v249 = vpop.f32.mrf.mxu0
    %v250 = vadd.f32 0.0, %v249
    %v251 = vpop.f32.mrf.mxu0
    %252 = vdwg.mxu0
    %v253 = vmul.f32 %v239, 0.25
    %v254 = vmul.f32 %v242, 0.25
    %v255 = vmul.f32 %v247, 0.25
    %v256 = vmul.f32 %v250, 0.25
    %v257 = vadd.f32 %v253, %v103
    %v258 = vadd.f32 %v254, %v104
    %v259 = vadd.f32 %v255, %v105
    %v260 = vadd.f32 %v256, %v106
    %v261 = vsel %vm59, %v257, -inf
    %262 = vmax.xlane.f32.xlu0 %v261
    %v263 = vpop.xlane.xlu0 %262
    %v264 = vsel %vm59, %v258, -inf
    %265 = vmax.xlane.f32.xlu0 %v264
    %v266 = vpop.xlane.xlu0 %265
    %v267 = vsel %vm59, %v259, -inf
    %268 = vmax.xlane.f32.xlu0 %v267
    %v269 = vpop.xlane.xlu0 %268
    %v270 = vsel %vm59, %v260, -inf
    %271 = vmax.xlane.f32.xlu0 %v270
    %v272 = vpop.xlane.xlu0 %271
    %v273 = vsub.f32 %v257, %v263
    %v274 = vsub.f32 %v258, %v266
    %v275 = vsub.f32 %v259, %v269
    %v276 = vsub.f32 %v260, %v272
    %v277 = vmul.f32 %v273, 1.442695
    %v278 = vpow.pop %v277
    %v279 = vmul.f32 %v274, 1.442695
    %v280 = vpow.pop %v279
    %v281 = vmul.f32 %v275, 1.442695
    %v282 = vpow.pop %v281
    %v283 = vmul.f32 %v276, 1.442695
    %v284 = vpow.pop %v283
    %v285 = vsel %vm59, %v278, 0.0
    %286 = vadd.xlane.f32.xlu0 %v285
    %v287 = vpop.xlane.xlu0 %286
    %v288 = vsel %vm59, %v280, 0.0
    %289 = vadd.xlane.f32.xlu0 %v288
    %v290 = vpop.xlane.xlu0 %289
    %v291 = vsel %vm59, %v282, 0.0
    %292 = vadd.xlane.f32.xlu0 %v291
    %v293 = vpop.xlane.xlu0 %292
    %v294 = vsel %vm59, %v284, 0.0
    %295 = vadd.xlane.f32.xlu0 %v294
    %v296 = vpop.xlane.xlu0 %295
    %v297 = vrcp.pop %v287
    %v298 = vrcp.pop %v290
    %v299 = vrcp.pop %v293
    %v300 = vrcp.pop %v296
    %v301 = vmul.f32 %v278, %v297
    %v302 = vmul.f32 %v280, %v298
    %v303 = vmul.f32 %v282, %v299
    %v304 = vmul.f32 %v284, %v300
    %v305 = vpack.c.bf16 %v302, %v301
    %v306 = vpack.c.bf16 %v304, %v303
    %307 = vrot.lane.b32.xlu0 %v183, 64
    %v308 = vpop.permute.xlu0 %307
    %309 = vrot.lane.b32.xlu0 %v184, 64
    %v310 = vpop.permute.xlu0 %309
    %v314 = vsel %vm59, %v305, 0
    %v317 = vsel %vm59, %v306, 0
    %319 = vmatprep.subr.bf16.mxu0 0
    %320 = vmatpush1.bf16.msra.mxu0 0
    %321 = vmatprep.subr.bf16.mxu0 0
    %322 = vmatpush1.bf16.msra.mxu0 0
    %323 = vmatprep.subr.bf16.mxu0 0
    %324 = vmatpush1.bf16.msra.mxu0 0
    %325 = vmatprep.subr.bf16.mxu0 0
    %326 = vmatpush1.bf16.msra.mxu0 0
    %327 = vmatprep.subr.bf16.mxu0 0
    %328 = vmatpush1.bf16.msra.mxu0 0
    %329 = vmatprep.subr.bf16.mxu0 0
    %330 = vmatpush1.bf16.msra.mxu0 0
    %331 = vmatprep.subr.bf16.mxu0 0
    %332 = vmatpush1.bf16.msra.mxu0 %v310
    %333 = vmatprep.subr.bf16.mxu0 0
    %334 = vmatpush1.bf16.msra.mxu0 %v308
    %335 = vmatprep.subr.bf16.mxu0 0
    %336 = vmatpush2.bf16.msra.mxu0 0
    %337 = vmatprep.subr.bf16.mxu0 0
    %338 = vmatpush2.bf16.msra.mxu0 0
    %339 = vmatprep.subr.bf16.mxu0 0
    %340 = vmatpush2.bf16.msra.mxu0 0
    %341 = vmatprep.subr.bf16.mxu0 0
    %342 = vmatpush2.bf16.msra.mxu0 0
    %343 = vmatprep.subr.bf16.mxu0 0
    %344 = vmatpush2.bf16.msra.mxu0 0
    %345 = vmatprep.subr.bf16.mxu0 0
    %346 = vmatpush2.bf16.msra.mxu0 0
    %347 = vmatprep.subr.bf16.mxu0 0
    %348 = vmatpush2.bf16.msra.mxu0 0
    %349 = vmatprep.subr.bf16.mxu0 0
    %350 = vmatpush2.bf16.msra.mxu0 0
    %351 = vmatprep.mubr.bf16.mxu0 0
    %352 = vmatmul.mubr.bf16.gmra.mxu0 %v314
    %v353 = vpop.f32.mrf.mxu0
    %v354 = vadd.f32 0.0, %v353
    %v355 = vpop.f32.mrf.mxu0
    %v356 = vpop.f32.mrf.mxu0
    %v357 = vadd.f32 0.0, %v356
    %v358 = vpop.f32.mrf.mxu0
    %359 = vmatprep.mubr.bf16.mxu0 0
    %360 = vmatmul.mubr.bf16.gmra.mxu0 %v317
    %v361 = vpop.f32.mrf.mxu0
    %v362 = vadd.f32 0.0, %v361
    %v363 = vpop.f32.mrf.mxu0
    %v364 = vpop.f32.mrf.mxu0
    %v365 = vadd.f32 0.0, %v364
    %v366 = vpop.f32.mrf.mxu0
    %367 = vdwg.mxu0
    %370 = vrot.lane.b32.xlu0 %v362, 16
    %v371 = vpop.permute.xlu0 %370
    %372 = vrot.lane.b32.xlu0 %v365, 16
    %v373 = vpop.permute.xlu0 %372
    %v376 = vsel %vm191, %v354, %v371
    %v377 = vsel %vm191, %v357, %v373
    %v378 = vld [vmem:[%s6] sm:$0xf]
    %v379 = vld [vmem:[%s6 + $0x4] sm:$0xf]
    %v380 = vld [vmem:[%s6 + $0x8] sm:$0xf]
    %v381 = vld [vmem:[%s6 + $0xc] sm:$0xf]
    %v382 = vpack.c.bf16 %v377, %v376
    %v383 = vld [vmem:[%s7] sm:$0x1]
    %v385 = vlaneseq
    %v386 = vshrl.u32 %v385, 7
    %v387 = vsub.s32 0, %v386
    %v388 = vrot.slane %v383, %v387
    %v394 = vunpack.c.l.b16 %v378
    %v395 = vunpack.c.l.b16 %v379
    %v396 = vunpack.c.l.b16 %v380
    %v397 = vunpack.c.l.b16 %v381
    %v398 = vpack.c.b16 %v395, %v394
    %v399 = vpack.c.b16 %v397, %v396
    %v403 = vsel %vm59, %v382, 0
    %405 = vmatprep.subr.bf16.mxu0 0
    %406 = vmatpush1.bf16.msra.mxu0 0
    %407 = vmatprep.subr.bf16.mxu0 0
    %408 = vmatpush1.bf16.msra.mxu0 0
    %409 = vmatprep.subr.bf16.mxu0 0
    %410 = vmatpush1.bf16.msra.mxu0 0
    %411 = vmatprep.subr.bf16.mxu0 0
    %412 = vmatpush1.bf16.msra.mxu0 0
    %413 = vmatprep.subr.bf16.mxu0 0
    %414 = vmatpush1.bf16.msra.mxu0 0
    %415 = vmatprep.subr.bf16.mxu0 0
    %416 = vmatpush1.bf16.msra.mxu0 0
    %417 = vmatprep.subr.bf16.mxu0 0
    %418 = vmatpush1.bf16.msra.mxu0 %v399
    %419 = vmatprep.subr.bf16.mxu0 0
    %420 = vmatpush1.bf16.msra.mxu0 %v398
    %421 = vmatprep.subr.bf16.mxu0 0
    %422 = vmatpush2.bf16.msra.mxu0 0
    %423 = vmatprep.subr.bf16.mxu0 0
    %424 = vmatpush2.bf16.msra.mxu0 0
    %425 = vmatprep.subr.bf16.mxu0 0
    %426 = vmatpush2.bf16.msra.mxu0 0
    %427 = vmatprep.subr.bf16.mxu0 0
    %428 = vmatpush2.bf16.msra.mxu0 0
    %429 = vmatprep.subr.bf16.mxu0 0
    %430 = vmatpush2.bf16.msra.mxu0 0
    %431 = vmatprep.subr.bf16.mxu0 0
    %432 = vmatpush2.bf16.msra.mxu0 0
    %433 = vmatprep.subr.bf16.mxu0 0
    %434 = vmatpush2.bf16.msra.mxu0 0
    %435 = vmatprep.subr.bf16.mxu0 0
    %436 = vmatpush2.bf16.msra.mxu0 0
    %437 = vmatprep.mubr.bf16.mxu0 0
    %438 = vmatmul.mubr.bf16.gmra.mxu0 %v403
    %v439 = vpop.f32.mrf.mxu0
    %v440 = vadd.f32 %v388, %v439
    %v441 = vpop.f32.mrf.mxu0
    %v442 = vpop.f32.mrf.mxu0
    %v443 = vadd.f32 %v388, %v442
    %v444 = vpop.f32.mrf.mxu0
    %445 = vdwg.mxu0
    %v446 = vadd.f32 %v101, %v440
    %v447 = vadd.f32 %v102, %v443
    %v448 = vld [vmem:[%s8] sm:$0x1]
    %v449 = vld [vmem:[%s9] sm:$0x1]
    %v450 = vsel %vm59, %v446, 0.0
    %451 = vadd.xlane.f32.xlu0 %v450
    %v452 = vpop.xlane.xlu0 %451
    %v453 = vsel %vm59, %v447, 0.0
    %454 = vadd.xlane.f32.xlu0 %v453
    %v455 = vpop.xlane.xlu0 %454
    %v456 = vmul.f32 %v452, %v66
    %v457 = vmul.f32 %v455, %v66
    %v458 = vsub.f32 %v446, %v456
    %v459 = vsub.f32 %v447, %v457
    %v460 = vmul.f32 %v458, %v458
    %v461 = vmul.f32 %v459, %v459
    %v462 = vsel %vm59, %v460, 0.0
    %463 = vadd.xlane.f32.xlu0 %v462
    %v464 = vpop.xlane.xlu0 %463
    %v465 = vsel %vm59, %v461, 0.0
    %466 = vadd.xlane.f32.xlu0 %v465
    %v467 = vpop.xlane.xlu0 %466
    %v468 = vmul.f32 %v464, %v66
    %v469 = vmul.f32 %v467, %v66
    %v470 = vadd.f32 %v468, 1e-12
    %v471 = vadd.f32 %v469, 1e-12
    %v472 = vrsqrt.pop %v470
    %v473 = vrsqrt.pop %v471
    %v474 = vmul.f32 %v458, %v472
    %v475 = vmul.f32 %v459, %v473
    %v477 = vlaneseq
    %v478 = vshrl.u32 %v477, 7
    %v479 = vsub.s32 0, %v478
    %v480 = vrot.slane %v448, %v479
    %v482 = vmul.f32 %v474, %v480
    %v483 = vmul.f32 %v475, %v480
    %v485 = vlaneseq
    %v486 = vshrl.u32 %v485, 7
    %v487 = vsub.s32 0, %v486
    %v488 = vrot.slane %v449, %v487
    %v490 = vadd.f32 %v482, %v488
    %v491 = vadd.f32 %v483, %v488
    %v492 = vld [vmem:[%s10] sm:$0xf]
    %v493 = vld [vmem:[%s10 + $0x4] sm:$0xf]
    %v494 = vld [vmem:[%s10 + $0x8] sm:$0xf]
    %v495 = vld [vmem:[%s10 + $0xc] sm:$0xf]
    %v496 = vpack.c.bf16 %v491, %v490
    %v497 = vld [vmem:[%s11] sm:$0x1]
    %v499 = vlaneseq
    %v500 = vshrl.u32 %v499, 7
    %v501 = vsub.s32 0, %v500
    %v502 = vrot.slane %v497, %v501
    %v508 = vunpack.c.l.b16 %v492
    %v509 = vunpack.c.l.b16 %v493
    %v510 = vunpack.c.l.b16 %v494
    %v511 = vunpack.c.l.b16 %v495
    %v512 = vpack.c.b16 %v509, %v508
    %v513 = vpack.c.b16 %v511, %v510
    %v517 = vsel %vm59, %v496, 0
    %519 = vmatprep.subr.bf16.mxu0 0
    %520 = vmatpush1.bf16.msra.mxu0 0
    %521 = vmatprep.subr.bf16.mxu0 0
    %522 = vmatpush1.bf16.msra.mxu0 0
    %523 = vmatprep.subr.bf16.mxu0 0
    %524 = vmatpush1.bf16.msra.mxu0 0
    %525 = vmatprep.subr.bf16.mxu0 0
    %526 = vmatpush1.bf16.msra.mxu0 0
    %527 = vmatprep.subr.bf16.mxu0 0
    %528 = vmatpush1.bf16.msra.mxu0 0
    %529 = vmatprep.subr.bf16.mxu0 0
    %530 = vmatpush1.bf16.msra.mxu0 0
    %531 = vmatprep.subr.bf16.mxu0 0
    %532 = vmatpush1.bf16.msra.mxu0 %v513
    %533 = vmatprep.subr.bf16.mxu0 0
    %534 = vmatpush1.bf16.msra.mxu0 %v512
    %535 = vmatprep.subr.bf16.mxu0 0
    %536 = vmatpush2.bf16.msra.mxu0 0
    %537 = vmatprep.subr.bf16.mxu0 0
    %538 = vmatpush2.bf16.msra.mxu0 0
    %539 = vmatprep.subr.bf16.mxu0 0
    %540 = vmatpush2.bf16.msra.mxu0 0
    %541 = vmatprep.subr.bf16.mxu0 0
    %542 = vmatpush2.bf16.msra.mxu0 0
    %543 = vmatprep.subr.bf16.mxu0 0
    %544 = vmatpush2.bf16.msra.mxu0 0
    %545 = vmatprep.subr.bf16.mxu0 0
    %546 = vmatpush2.bf16.msra.mxu0 0
    %547 = vmatprep.subr.bf16.mxu0 0
    %548 = vmatpush2.bf16.msra.mxu0 0
    %549 = vmatprep.subr.bf16.mxu0 0
    %550 = vmatpush2.bf16.msra.mxu0 0
    %551 = vmatprep.mubr.bf16.mxu0 0
    %552 = vmatmul.mubr.bf16.gmra.mxu0 %v517
    %v553 = vpop.f32.mrf.mxu0
    %v554 = vadd.f32 %v502, %v553
    %v555 = vpop.f32.mrf.mxu0
    %v556 = vpop.f32.mrf.mxu0
    %v557 = vadd.f32 %v502, %v556
    %v558 = vpop.f32.mrf.mxu0
    %559 = vdwg.mxu0
    %v560 = vmul.f32 %v554, 0.70710677
    %v561 = vmul.f32 %v557, 0.70710677
    %v562 = vand.u32 2147483647, %v560
    %v563 = vand.u32 2147483647, %v561
    %v564 = vmul.f32 %v562, 0.3275911
    %v565 = vmul.f32 %v563, 0.3275911
    %v566 = vadd.f32 %v564, 1.0
    %v567 = vadd.f32 %v565, 1.0
    %v568 = vrcp.pop %v566
    %v569 = vmul.f32 1.0, %v568
    %v570 = vrcp.pop %v567
    %v571 = vmul.f32 1.0, %v570
    %v572 = vmul.f32 %v569, 1.0614054
    %v573 = vmul.f32 %v571, 1.0614054
    %v574 = vadd.f32 %v572, -1.4531521
    %v575 = vadd.f32 %v573, -1.4531521
    %v576 = vmul.f32 %v574, %v569
    %v577 = vmul.f32 %v575, %v571
    %v578 = vadd.f32 %v576, 1.4214138
    %v579 = vadd.f32 %v577, 1.4214138
    %v580 = vmul.f32 %v578, %v569
    %v581 = vmul.f32 %v579, %v571
    %v582 = vadd.f32 %v580, -0.28449672
    %v583 = vadd.f32 %v581, -0.28449672
    %v584 = vmul.f32 %v582, %v569
    %v585 = vmul.f32 %v583, %v571
    %v586 = vadd.f32 %v584, 0.2548296
    %v587 = vadd.f32 %v585, 0.2548296
    %v588 = vmul.f32 %v586, %v569
    %v589 = vmul.f32 %v587, %v571
    %v590 = vsub.f32 0.0, %v562
    %v591 = vsub.f32 0.0, %v563
    %v592 = vmul.f32 %v590, %v562
    %v593 = vmul.f32 %v591, %v563
    %v594 = vmul.f32 %v592, 1.442695
    %v595 = vpow.pop %v594
    %v596 = vmul.f32 %v593, 1.442695
    %v597 = vpow.pop %v596
    %v598 = vmul.f32 %v588, %v595
    %v599 = vmul.f32 %v589, %v597
    %v600 = vsub.f32 1.0, %v598
    %v601 = vsub.f32 1.0, %v599
    %vm602 = vcmp.lt.f32.partialorder %v560, 0.0
    %vm603 = vcmp.lt.f32.partialorder %v561, 0.0
    %v604 = vsub.f32 0.0, %v600
    %v605 = vsub.f32 0.0, %v601
    %v606 = vsel %vm602, %v604, %v600
    %v607 = vsel %vm603, %v605, %v601
    %v608 = vmul.f32 %v554, 0.5
    %v609 = vmul.f32 %v557, 0.5
    %v610 = vadd.f32 %v606, 1.0
    %v611 = vadd.f32 %v607, 1.0
    %v612 = vmul.f32 %v608, %v610
    %v613 = vmul.f32 %v609, %v611
    %v614 = vld [vmem:[%s12] sm:$0xf]
    %v615 = vld [vmem:[%s12 + $0x4] sm:$0xf]
    %v616 = vld [vmem:[%s12 + $0x8] sm:$0xf]
    %v617 = vld [vmem:[%s12 + $0xc] sm:$0xf]
    %v618 = vld [vmem:[%s12 + $0x10] sm:$0xf]
    %v619 = vld [vmem:[%s12 + $0x14] sm:$0xf]
    %v620 = vld [vmem:[%s12 + $0x18] sm:$0xf]
    %v621 = vld [vmem:[%s12 + $0x1c] sm:$0xf]
    %v622 = vpack.c.bf16 %v613, %v612
    %v623 = vld [vmem:[%s13] sm:$0x1]
    %v625 = vlaneseq
    %v626 = vshrl.u32 %v625, 7
    %v627 = vsub.s32 0, %v626
    %v628 = vrot.slane %v623, %v627
    %v638 = vunpack.c.l.b16 %v614
    %v639 = vunpack.c.l.b16 %v615
    %v640 = vunpack.c.l.b16 %v616
    %v641 = vunpack.c.l.b16 %v617
    %v642 = vunpack.c.l.b16 %v618
    %v643 = vunpack.c.l.b16 %v619
    %v644 = vunpack.c.l.b16 %v620
    %v645 = vunpack.c.l.b16 %v621
    %v646 = vpack.c.b16 %v639, %v638
    %v647 = vpack.c.b16 %v641, %v640
    %v648 = vpack.c.b16 %v643, %v642
    %v649 = vpack.c.b16 %v645, %v644
    %vm654 = vcmask 523264
    %v656 = vsel %vm654, %v622, 0
    %658 = vmatprep.subr.bf16.mxu0 0
    %659 = vmatpush1.bf16.msra.mxu0 0
    %660 = vmatprep.subr.bf16.mxu0 0
    %661 = vmatpush1.bf16.msra.mxu0 0
    %662 = vmatprep.subr.bf16.mxu0 0
    %663 = vmatpush1.bf16.msra.mxu0 0
    %664 = vmatprep.subr.bf16.mxu0 0
    %665 = vmatpush1.bf16.msra.mxu0 0
    %666 = vmatprep.subr.bf16.mxu0 0
    %667 = vmatpush1.bf16.msra.mxu0 %v649
    %668 = vmatprep.subr.bf16.mxu0 0
    %669 = vmatpush1.bf16.msra.mxu0 %v648
    %670 = vmatprep.subr.bf16.mxu0 0
    %671 = vmatpush1.bf16.msra.mxu0 %v647
    %672 = vmatprep.subr.bf16.mxu0 0
    %673 = vmatpush1.bf16.msra.mxu0 %v646
    %674 = vmatprep.subr.bf16.mxu0 0
    %675 = vmatpush2.bf16.msra.mxu0 0
    %676 = vmatprep.subr.bf16.mxu0 0
    %677 = vmatpush2.bf16.msra.mxu0 0
    %678 = vmatprep.subr.bf16.mxu0 0
    %679 = vmatpush2.bf16.msra.mxu0 0
    %680 = vmatprep.subr.bf16.mxu0 0
    %681 = vmatpush2.bf16.msra.mxu0 0
    %682 = vmatprep.subr.bf16.mxu0 0
    %683 = vmatpush2.bf16.msra.mxu0 0
    %684 = vmatprep.subr.bf16.mxu0 0
    %685 = vmatpush2.bf16.msra.mxu0 0
    %686 = vmatprep.subr.bf16.mxu0 0
    %687 = vmatpush2.bf16.msra.mxu0 0
    %688 = vmatprep.subr.bf16.mxu0 0
    %689 = vmatpush2.bf16.msra.mxu0 0
    %690 = vmatprep.mubr.bf16.mxu0 0
    %691 = vmatmul.mubr.bf16.gmra.mxu0 %v656
    %v692 = vpop.f32.mrf.mxu0
    %v693 = vadd.f32 %v628, %v692
    %v694 = vpop.f32.mrf.mxu0
    %v695 = vpop.f32.mrf.mxu0
    %v696 = vadd.f32 %v628, %v695
    %v697 = vpop.f32.mrf.mxu0
    %698 = vdwg.mxu0
    %v699 = vadd.f32 %v490, %v693
    %v700 = vadd.f32 %v491, %v696
    %v701 = vld [vmem:[%s14] sm:$0x1]
    %v702 = vld [vmem:[%s15] sm:$0x1]
    %v703 = vsel %vm59, %v699, 0.0
    %704 = vadd.xlane.f32.xlu0 %v703
    %v705 = vpop.xlane.xlu0 %704
    %v706 = vsel %vm59, %v700, 0.0
    %707 = vadd.xlane.f32.xlu0 %v706
    %v708 = vpop.xlane.xlu0 %707
    %v709 = vmul.f32 %v705, %v66
    %v710 = vmul.f32 %v708, %v66
    %v711 = vsub.f32 %v699, %v709
    %v712 = vsub.f32 %v700, %v710
    %v713 = vmul.f32 %v711, %v711
    %v714 = vmul.f32 %v712, %v712
    %v715 = vsel %vm59, %v713, 0.0
    %716 = vadd.xlane.f32.xlu0 %v715
    %v717 = vpop.xlane.xlu0 %716
    %v718 = vsel %vm59, %v714, 0.0
    %719 = vadd.xlane.f32.xlu0 %v718
    %v720 = vpop.xlane.xlu0 %719
    %v721 = vmul.f32 %v717, %v66
    %v722 = vmul.f32 %v720, %v66
    %v723 = vadd.f32 %v721, 1e-12
    %v724 = vadd.f32 %v722, 1e-12
    %v725 = vrsqrt.pop %v723
    %v726 = vrsqrt.pop %v724
    %v727 = vmul.f32 %v711, %v725
    %v728 = vmul.f32 %v712, %v726
    %v730 = vlaneseq
    %v731 = vshrl.u32 %v730, 7
    %v732 = vsub.s32 0, %v731
    %v733 = vrot.slane %v701, %v732
    %v735 = vmul.f32 %v727, %v733
    %v736 = vmul.f32 %v728, %v733
    %v738 = vlaneseq
    %v739 = vshrl.u32 %v738, 7
    %v740 = vsub.s32 0, %v739
    %v741 = vrot.slane %v702, %v740
    %v743 = vadd.f32 %v735, %v741
    %v744 = vadd.f32 %v736, %v741
    %s745 = scalar_lea.vmem %s4, 16
    %v746 = vld [vmem:[%s745] sm:$0xf]
    %v747 = vld [vmem:[%s745 + $0x4] sm:$0xf]
    %v748 = vld [vmem:[%s745 + $0x8] sm:$0xf]
    %v749 = vld [vmem:[%s745 + $0xc] sm:$0xf]
    %v750 = vpack.c.bf16 %v744, %v743
    %s751 = scalar_lea.vmem %s5, 1
    %v752 = vld [vmem:[%s751] sm:$0x1]
    %v754 = vlaneseq
    %v755 = vshrl.u32 %v754, 7
    %v756 = vsub.s32 0, %v755
    %v757 = vrot.slane %v752, %v756
    %v763 = vunpack.c.l.b16 %v746
    %v764 = vunpack.c.l.b16 %v747
    %v765 = vunpack.c.l.b16 %v748
    %v766 = vunpack.c.l.b16 %v749
    %v767 = vpack.c.b16 %v764, %v763
    %v768 = vpack.c.b16 %v766, %v765
    %v772 = vsel %vm59, %v750, 0
    %774 = vmatprep.subr.bf16.mxu0 0
    %775 = vmatpush1.bf16.msra.mxu0 0
    %776 = vmatprep.subr.bf16.mxu0 0
    %777 = vmatpush1.bf16.msra.mxu0 0
    %778 = vmatprep.subr.bf16.mxu0 0
    %779 = vmatpush1.bf16.msra.mxu0 0
    %780 = vmatprep.subr.bf16.mxu0 0
    %781 = vmatpush1.bf16.msra.mxu0 0
    %782 = vmatprep.subr.bf16.mxu0 0
    %783 = vmatpush1.bf16.msra.mxu0 0
    %784 = vmatprep.subr.bf16.mxu0 0
    %785 = vmatpush1.bf16.msra.mxu0 0
    %786 = vmatprep.subr.bf16.mxu0 0
    %787 = vmatpush1.bf16.msra.mxu0 %v768
    %788 = vmatprep.subr.bf16.mxu0 0
    %789 = vmatpush1.bf16.msra.mxu0 %v767
    %790 = vmatprep.subr.bf16.mxu0 0
    %791 = vmatpush2.bf16.msra.mxu0 0
    %792 = vmatprep.subr.bf16.mxu0 0
    %793 = vmatpush2.bf16.msra.mxu0 0
    %794 = vmatprep.subr.bf16.mxu0 0
    %795 = vmatpush2.bf16.msra.mxu0 0
    %796 = vmatprep.subr.bf16.mxu0 0
    %797 = vmatpush2.bf16.msra.mxu0 0
    %798 = vmatprep.subr.bf16.mxu0 0
    %799 = vmatpush2.bf16.msra.mxu0 0
    %800 = vmatprep.subr.bf16.mxu0 0
    %801 = vmatpush2.bf16.msra.mxu0 0
    %802 = vmatprep.subr.bf16.mxu0 0
    %803 = vmatpush2.bf16.msra.mxu0 0
    %804 = vmatprep.subr.bf16.mxu0 0
    %805 = vmatpush2.bf16.msra.mxu0 0
    %806 = vmatprep.mubr.bf16.mxu0 0
    %807 = vmatmul.mubr.bf16.gmra.mxu0 %v772
    %v808 = vpop.f32.mrf.mxu0
    %v809 = vadd.f32 %v757, %v808
    %v810 = vpop.f32.mrf.mxu0
    %v811 = vpop.f32.mrf.mxu0
    %v812 = vadd.f32 %v757, %v811
    %v813 = vpop.f32.mrf.mxu0
    %814 = vdwg.mxu0
    %817 = vrot.lane.b32.xlu0 %v809, 112
    %v818 = vpop.permute.xlu0 %817
    %819 = vrot.lane.b32.xlu0 %v812, 112
    %v820 = vpop.permute.xlu0 %819
    %v823 = vpack.c.bf16 %v812, %v809
    %v824 = vpack.c.bf16 %v820, %v818
    %827 = vrot.lane.b32.xlu0 %v823, 96
    %v828 = vpop.permute.xlu0 %827
    %829 = vrot.lane.b32.xlu0 %v824, 96
    %v830 = vpop.permute.xlu0 %829
    %v832 = vsel %vm191, %v823, 0
    %v835 = vsel %vm191, %v824, 0
    %v838 = vsel %vm191, %v828, 0
    %v841 = vsel %vm191, %v830, 0
    %843 = vmatprep.subr.bf16.mxu0 0
    %844 = vmatpush1.bf16.xpose.msra.mxu0 0
    %845 = vmatprep.subr.bf16.mxu0 0
    %846 = vmatpush1.bf16.xpose.msra.mxu0 0
    %847 = vmatprep.subr.bf16.mxu0 0
    %848 = vmatpush1.bf16.xpose.msra.mxu0 0
    %849 = vmatprep.subr.bf16.mxu0 0
    %850 = vmatpush1.bf16.xpose.msra.mxu0 0
    %851 = vmatprep.subr.bf16.mxu0 0
    %852 = vmatpush1.bf16.xpose.msra.mxu0 0
    %853 = vmatprep.subr.bf16.mxu0 0
    %854 = vmatpush1.bf16.xpose.msra.mxu0 0
    %855 = vmatprep.subr.bf16.mxu0 0
    %856 = vmatpush1.bf16.xpose.msra.mxu0 %v841
    %857 = vmatprep.subr.bf16.mxu0 0
    %858 = vmatpush1.bf16.xpose.msra.mxu0 %v838
    %859 = vmatprep.subr.bf16.mxu0 0
    %860 = vmatpush2.bf16.xpose.msra.mxu0 0
    %861 = vmatprep.subr.bf16.mxu0 0
    %862 = vmatpush2.bf16.xpose.msra.mxu0 0
    %863 = vmatprep.subr.bf16.mxu0 0
    %864 = vmatpush2.bf16.xpose.msra.mxu0 0
    %865 = vmatprep.subr.bf16.mxu0 0
    %866 = vmatpush2.bf16.xpose.msra.mxu0 0
    %867 = vmatprep.subr.bf16.mxu0 0
    %868 = vmatpush2.bf16.xpose.msra.mxu0 0
    %869 = vmatprep.subr.bf16.mxu0 0
    %870 = vmatpush2.bf16.xpose.msra.mxu0 0
    %871 = vmatprep.subr.bf16.mxu0 0
    %872 = vmatpush2.bf16.xpose.msra.mxu0 0
    %873 = vmatprep.subr.bf16.mxu0 0
    %874 = vmatpush2.bf16.xpose.msra.mxu0 0
    %875 = vmatprep.mubr.bf16.mxu0 0
    %876 = vmatmul.mubr.bf16.gmra.mxu0 %v832
    %v877 = vpop.f32.mrf.mxu0
    %v878 = vadd.f32 0.0, %v877
    %v879 = vpop.f32.mrf.mxu0
    %v880 = vpop.f32.mrf.mxu0
    %v881 = vadd.f32 0.0, %v880
    %v882 = vpop.f32.mrf.mxu0
    %883 = vmatprep.mubr.bf16.mxu0 0
    %884 = vmatmul.mubr.bf16.gmra.mxu0 %v835
    %v885 = vpop.f32.mrf.mxu0
    %v886 = vadd.f32 0.0, %v885
    %v887 = vpop.f32.mrf.mxu0
    %v888 = vpop.f32.mrf.mxu0
    %v889 = vadd.f32 0.0, %v888
    %v890 = vpop.f32.mrf.mxu0
    %891 = vdwg.mxu0
    %v892 = vmul.f32 %v878, 0.25
    %v893 = vmul.f32 %v881, 0.25
    %v894 = vmul.f32 %v886, 0.25
    %v895 = vmul.f32 %v889, 0.25
    %v896 = vadd.f32 %v892, %v103
    %v897 = vadd.f32 %v893, %v104
    %v898 = vadd.f32 %v894, %v105
    %v899 = vadd.f32 %v895, %v106
    %v900 = vsel %vm59, %v896, -inf
    %901 = vmax.xlane.f32.xlu0 %v900
    %v902 = vpop.xlane.xlu0 %901
    %v903 = vsel %vm59, %v897, -inf
    %904 = vmax.xlane.f32.xlu0 %v903
    %v905 = vpop.xlane.xlu0 %904
    %v906 = vsel %vm59, %v898, -inf
    %907 = vmax.xlane.f32.xlu0 %v906
    %v908 = vpop.xlane.xlu0 %907
    %v909 = vsel %vm59, %v899, -inf
    %910 = vmax.xlane.f32.xlu0 %v909
    %v911 = vpop.xlane.xlu0 %910
    %v912 = vsub.f32 %v896, %v902
    %v913 = vsub.f32 %v897, %v905
    %v914 = vsub.f32 %v898, %v908
    %v915 = vsub.f32 %v899, %v911
    %v916 = vmul.f32 %v912, 1.442695
    %v917 = vpow.pop %v916
    %v918 = vmul.f32 %v913, 1.442695
    %v919 = vpow.pop %v918
    %v920 = vmul.f32 %v914, 1.442695
    %v921 = vpow.pop %v920
    %v922 = vmul.f32 %v915, 1.442695
    %v923 = vpow.pop %v922
    %v924 = vsel %vm59, %v917, 0.0
    %925 = vadd.xlane.f32.xlu0 %v924
    %v926 = vpop.xlane.xlu0 %925
    %v927 = vsel %vm59, %v919, 0.0
    %928 = vadd.xlane.f32.xlu0 %v927
    %v929 = vpop.xlane.xlu0 %928
    %v930 = vsel %vm59, %v921, 0.0
    %931 = vadd.xlane.f32.xlu0 %v930
    %v932 = vpop.xlane.xlu0 %931
    %v933 = vsel %vm59, %v923, 0.0
    %934 = vadd.xlane.f32.xlu0 %v933
    %v935 = vpop.xlane.xlu0 %934
    %v936 = vrcp.pop %v926
    %v937 = vrcp.pop %v929
    %v938 = vrcp.pop %v932
    %v939 = vrcp.pop %v935
    %v940 = vmul.f32 %v917, %v936
    %v941 = vmul.f32 %v919, %v937
    %v942 = vmul.f32 %v921, %v938
    %v943 = vmul.f32 %v923, %v939
    %v944 = vpack.c.bf16 %v941, %v940
    %v945 = vpack.c.bf16 %v943, %v942
    %946 = vrot.lane.b32.xlu0 %v823, 64
    %v947 = vpop.permute.xlu0 %946
    %948 = vrot.lane.b32.xlu0 %v824, 64
    %v949 = vpop.permute.xlu0 %948
    %v953 = vsel %vm59, %v944, 0
    %v956 = vsel %vm59, %v945, 0
    %958 = vmatprep.subr.bf16.mxu0 0
    %959 = vmatpush1.bf16.msra.mxu0 0
    %960 = vmatprep.subr.bf16.mxu0 0
    %961 = vmatpush1.bf16.msra.mxu0 0
    %962 = vmatprep.subr.bf16.mxu0 0
    %963 = vmatpush1.bf16.msra.mxu0 0
    %964 = vmatprep.subr.bf16.mxu0 0
    %965 = vmatpush1.bf16.msra.mxu0 0
    %966 = vmatprep.subr.bf16.mxu0 0
    %967 = vmatpush1.bf16.msra.mxu0 0
    %968 = vmatprep.subr.bf16.mxu0 0
    %969 = vmatpush1.bf16.msra.mxu0 0
    %970 = vmatprep.subr.bf16.mxu0 0
    %971 = vmatpush1.bf16.msra.mxu0 %v949
    %972 = vmatprep.subr.bf16.mxu0 0
    %973 = vmatpush1.bf16.msra.mxu0 %v947
    %974 = vmatprep.subr.bf16.mxu0 0
    %975 = vmatpush2.bf16.msra.mxu0 0
    %976 = vmatprep.subr.bf16.mxu0 0
    %977 = vmatpush2.bf16.msra.mxu0 0
    %978 = vmatprep.subr.bf16.mxu0 0
    %979 = vmatpush2.bf16.msra.mxu0 0
    %980 = vmatprep.subr.bf16.mxu0 0
    %981 = vmatpush2.bf16.msra.mxu0 0
    %982 = vmatprep.subr.bf16.mxu0 0
    %983 = vmatpush2.bf16.msra.mxu0 0
    %984 = vmatprep.subr.bf16.mxu0 0
    %985 = vmatpush2.bf16.msra.mxu0 0
    %986 = vmatprep.subr.bf16.mxu0 0
    %987 = vmatpush2.bf16.msra.mxu0 0
    %988 = vmatprep.subr.bf16.mxu0 0
    %989 = vmatpush2.bf16.msra.mxu0 0
    %990 = vmatprep.mubr.bf16.mxu0 0
    %991 = vmatmul.mubr.bf16.gmra.mxu0 %v953
    %v992 = vpop.f32.mrf.mxu0
    %v993 = vadd.f32 0.0, %v992
    %v994 = vpop.f32.mrf.mxu0
    %v995 = vpop.f32.mrf.mxu0
    %v996 = vadd.f32 0.0, %v995
    %v997 = vpop.f32.mrf.mxu0
    %998 = vmatprep.mubr.bf16.mxu0 0
    %999 = vmatmul.mubr.bf16.gmra.mxu0 %v956
    %v1000 = vpop.f32.mrf.mxu0
    %v1001 = vadd.f32 0.0, %v1000
    %v1002 = vpop.f32.mrf.mxu0
    %v1003 = vpop.f32.mrf.mxu0
    %v1004 = vadd.f32 0.0, %v1003
    %v1005 = vpop.f32.mrf.mxu0
    %1006 = vdwg.mxu0
    %1009 = vrot.lane.b32.xlu0 %v1001, 16
    %v1010 = vpop.permute.xlu0 %1009
    %1011 = vrot.lane.b32.xlu0 %v1004, 16
    %v1012 = vpop.permute.xlu0 %1011
    %v1015 = vsel %vm191, %v993, %v1010
    %v1016 = vsel %vm191, %v996, %v1012
    %s1017 = scalar_lea.vmem %s6, 16
    %v1018 = vld [vmem:[%s1017] sm:$0xf]
    %v1019 = vld [vmem:[%s1017 + $0x4] sm:$0xf]
    %v1020 = vld [vmem:[%s1017 + $0x8] sm:$0xf]
    %v1021 = vld [vmem:[%s1017 + $0xc] sm:$0xf]
    %v1022 = vpack.c.bf16 %v1016, %v1015
    %s1023 = scalar_lea.vmem %s7, 1
    %v1024 = vld [vmem:[%s1023] sm:$0x1]
    %v1026 = vlaneseq
    %v1027 = vshrl.u32 %v1026, 7
    %v1028 = vsub.s32 0, %v1027
    %v1029 = vrot.slane %v1024, %v1028
    %v1035 = vunpack.c.l.b16 %v1018
    %v1036 = vunpack.c.l.b16 %v1019
    %v1037 = vunpack.c.l.b16 %v1020
    %v1038 = vunpack.c.l.b16 %v1021
    %v1039 = vpack.c.b16 %v1036, %v1035
    %v1040 = vpack.c.b16 %v1038, %v1037
    %v1044 = vsel %vm59, %v1022, 0
    %1046 = vmatprep.subr.bf16.mxu0 0
    %1047 = vmatpush1.bf16.msra.mxu0 0
    %1048 = vmatprep.subr.bf16.mxu0 0
    %1049 = vmatpush1.bf16.msra.mxu0 0
    %1050 = vmatprep.subr.bf16.mxu0 0
    %1051 = vmatpush1.bf16.msra.mxu0 0
    %1052 = vmatprep.subr.bf16.mxu0 0
    %1053 = vmatpush1.bf16.msra.mxu0 0
    %1054 = vmatprep.subr.bf16.mxu0 0
    %1055 = vmatpush1.bf16.msra.mxu0 0
    %1056 = vmatprep.subr.bf16.mxu0 0
    %1057 = vmatpush1.bf16.msra.mxu0 0
    %1058 = vmatprep.subr.bf16.mxu0 0
    %1059 = vmatpush1.bf16.msra.mxu0 %v1040
    %1060 = vmatprep.subr.bf16.mxu0 0
    %1061 = vmatpush1.bf16.msra.mxu0 %v1039
    %1062 = vmatprep.subr.bf16.mxu0 0
    %1063 = vmatpush2.bf16.msra.mxu0 0
    %1064 = vmatprep.subr.bf16.mxu0 0
    %1065 = vmatpush2.bf16.msra.mxu0 0
    %1066 = vmatprep.subr.bf16.mxu0 0
    %1067 = vmatpush2.bf16.msra.mxu0 0
    %1068 = vmatprep.subr.bf16.mxu0 0
    %1069 = vmatpush2.bf16.msra.mxu0 0
    %1070 = vmatprep.subr.bf16.mxu0 0
    %1071 = vmatpush2.bf16.msra.mxu0 0
    %1072 = vmatprep.subr.bf16.mxu0 0
    %1073 = vmatpush2.bf16.msra.mxu0 0
    %1074 = vmatprep.subr.bf16.mxu0 0
    %1075 = vmatpush2.bf16.msra.mxu0 0
    %1076 = vmatprep.subr.bf16.mxu0 0
    %1077 = vmatpush2.bf16.msra.mxu0 0
    %1078 = vmatprep.mubr.bf16.mxu0 0
    %1079 = vmatmul.mubr.bf16.gmra.mxu0 %v1044
    %v1080 = vpop.f32.mrf.mxu0
    %v1081 = vadd.f32 %v1029, %v1080
    %v1082 = vpop.f32.mrf.mxu0
    %v1083 = vpop.f32.mrf.mxu0
    %v1084 = vadd.f32 %v1029, %v1083
    %v1085 = vpop.f32.mrf.mxu0
    %1086 = vdwg.mxu0
    %v1087 = vadd.f32 %v743, %v1081
    %v1088 = vadd.f32 %v744, %v1084
    %s1089 = scalar_lea.vmem %s8, 1
    %v1090 = vld [vmem:[%s1089] sm:$0x1]
    %s1091 = scalar_lea.vmem %s9, 1
    %v1092 = vld [vmem:[%s1091] sm:$0x1]
    %v1093 = vsel %vm59, %v1087, 0.0
    %1094 = vadd.xlane.f32.xlu0 %v1093
    %v1095 = vpop.xlane.xlu0 %1094
    %v1096 = vsel %vm59, %v1088, 0.0
    %1097 = vadd.xlane.f32.xlu0 %v1096
    %v1098 = vpop.xlane.xlu0 %1097
    %v1099 = vmul.f32 %v1095, %v66
    %v1100 = vmul.f32 %v1098, %v66
    %v1101 = vsub.f32 %v1087, %v1099
    %v1102 = vsub.f32 %v1088, %v1100
    %v1103 = vmul.f32 %v1101, %v1101
    %v1104 = vmul.f32 %v1102, %v1102
    %v1105 = vsel %vm59, %v1103, 0.0
    %1106 = vadd.xlane.f32.xlu0 %v1105
    %v1107 = vpop.xlane.xlu0 %1106
    %v1108 = vsel %vm59, %v1104, 0.0
    %1109 = vadd.xlane.f32.xlu0 %v1108
    %v1110 = vpop.xlane.xlu0 %1109
    %v1111 = vmul.f32 %v1107, %v66
    %v1112 = vmul.f32 %v1110, %v66
    %v1113 = vadd.f32 %v1111, 1e-12
    %v1114 = vadd.f32 %v1112, 1e-12
    %v1115 = vrsqrt.pop %v1113
    %v1116 = vrsqrt.pop %v1114
    %v1117 = vmul.f32 %v1101, %v1115
    %v1118 = vmul.f32 %v1102, %v1116
    %v1120 = vlaneseq
    %v1121 = vshrl.u32 %v1120, 7
    %v1122 = vsub.s32 0, %v1121
    %v1123 = vrot.slane %v1090, %v1122
    %v1125 = vmul.f32 %v1117, %v1123
    %v1126 = vmul.f32 %v1118, %v1123
    %v1128 = vlaneseq
    %v1129 = vshrl.u32 %v1128, 7
    %v1130 = vsub.s32 0, %v1129
    %v1131 = vrot.slane %v1092, %v1130
    %v1133 = vadd.f32 %v1125, %v1131
    %v1134 = vadd.f32 %v1126, %v1131
    %s1135 = scalar_lea.vmem %s10, 16
    %v1136 = vld [vmem:[%s1135] sm:$0xf]
    %v1137 = vld [vmem:[%s1135 + $0x4] sm:$0xf]
    %v1138 = vld [vmem:[%s1135 + $0x8] sm:$0xf]
    %v1139 = vld [vmem:[%s1135 + $0xc] sm:$0xf]
    %v1140 = vpack.c.bf16 %v1134, %v1133
    %s1141 = scalar_lea.vmem %s11, 1
    %v1142 = vld [vmem:[%s1141] sm:$0x1]
    %v1144 = vlaneseq
    %v1145 = vshrl.u32 %v1144, 7
    %v1146 = vsub.s32 0, %v1145
    %v1147 = vrot.slane %v1142, %v1146
    %v1153 = vunpack.c.l.b16 %v1136
    %v1154 = vunpack.c.l.b16 %v1137
    %v1155 = vunpack.c.l.b16 %v1138
    %v1156 = vunpack.c.l.b16 %v1139
    %v1157 = vpack.c.b16 %v1154, %v1153
    %v1158 = vpack.c.b16 %v1156, %v1155
    %v1162 = vsel %vm59, %v1140, 0
    %1164 = vmatprep.subr.bf16.mxu0 0
    %1165 = vmatpush1.bf16.msra.mxu0 0
    %1166 = vmatprep.subr.bf16.mxu0 0
    %1167 = vmatpush1.bf16.msra.mxu0 0
    %1168 = vmatprep.subr.bf16.mxu0 0
    %1169 = vmatpush1.bf16.msra.mxu0 0
    %1170 = vmatprep.subr.bf16.mxu0 0
    %1171 = vmatpush1.bf16.msra.mxu0 0
    %1172 = vmatprep.subr.bf16.mxu0 0
    %1173 = vmatpush1.bf16.msra.mxu0 0
    %1174 = vmatprep.subr.bf16.mxu0 0
    %1175 = vmatpush1.bf16.msra.mxu0 0
    %1176 = vmatprep.subr.bf16.mxu0 0
    %1177 = vmatpush1.bf16.msra.mxu0 %v1158
    %1178 = vmatprep.subr.bf16.mxu0 0
    %1179 = vmatpush1.bf16.msra.mxu0 %v1157
    %1180 = vmatprep.subr.bf16.mxu0 0
    %1181 = vmatpush2.bf16.msra.mxu0 0
    %1182 = vmatprep.subr.bf16.mxu0 0
    %1183 = vmatpush2.bf16.msra.mxu0 0
    %1184 = vmatprep.subr.bf16.mxu0 0
    %1185 = vmatpush2.bf16.msra.mxu0 0
    %1186 = vmatprep.subr.bf16.mxu0 0
    %1187 = vmatpush2.bf16.msra.mxu0 0
    %1188 = vmatprep.subr.bf16.mxu0 0
    %1189 = vmatpush2.bf16.msra.mxu0 0
    %1190 = vmatprep.subr.bf16.mxu0 0
    %1191 = vmatpush2.bf16.msra.mxu0 0
    %1192 = vmatprep.subr.bf16.mxu0 0
    %1193 = vmatpush2.bf16.msra.mxu0 0
    %1194 = vmatprep.subr.bf16.mxu0 0
    %1195 = vmatpush2.bf16.msra.mxu0 0
    %1196 = vmatprep.mubr.bf16.mxu0 0
    %1197 = vmatmul.mubr.bf16.gmra.mxu0 %v1162
    %v1198 = vpop.f32.mrf.mxu0
    %v1199 = vadd.f32 %v1147, %v1198
    %v1200 = vpop.f32.mrf.mxu0
    %v1201 = vpop.f32.mrf.mxu0
    %v1202 = vadd.f32 %v1147, %v1201
    %v1203 = vpop.f32.mrf.mxu0
    %1204 = vdwg.mxu0
    %v1205 = vmul.f32 %v1199, 0.70710677
    %v1206 = vmul.f32 %v1202, 0.70710677
    %v1207 = vand.u32 2147483647, %v1205
    %v1208 = vand.u32 2147483647, %v1206
    %v1209 = vmul.f32 %v1207, 0.3275911
    %v1210 = vmul.f32 %v1208, 0.3275911
    %v1211 = vadd.f32 %v1209, 1.0
    %v1212 = vadd.f32 %v1210, 1.0
    %v1213 = vrcp.pop %v1211
    %v1214 = vmul.f32 1.0, %v1213
    %v1215 = vrcp.pop %v1212
    %v1216 = vmul.f32 1.0, %v1215
    %v1217 = vmul.f32 %v1214, 1.0614054
    %v1218 = vmul.f32 %v1216, 1.0614054
    %v1219 = vadd.f32 %v1217, -1.4531521
    %v1220 = vadd.f32 %v1218, -1.4531521
    %v1221 = vmul.f32 %v1219, %v1214
    %v1222 = vmul.f32 %v1220, %v1216
    %v1223 = vadd.f32 %v1221, 1.4214138
    %v1224 = vadd.f32 %v1222, 1.4214138
    %v1225 = vmul.f32 %v1223, %v1214
    %v1226 = vmul.f32 %v1224, %v1216
    %v1227 = vadd.f32 %v1225, -0.28449672
    %v1228 = vadd.f32 %v1226, -0.28449672
    %v1229 = vmul.f32 %v1227, %v1214
    %v1230 = vmul.f32 %v1228, %v1216
    %v1231 = vadd.f32 %v1229, 0.2548296
    %v1232 = vadd.f32 %v1230, 0.2548296
    %v1233 = vmul.f32 %v1231, %v1214
    %v1234 = vmul.f32 %v1232, %v1216
    %v1235 = vsub.f32 0.0, %v1207
    %v1236 = vsub.f32 0.0, %v1208
    %v1237 = vmul.f32 %v1235, %v1207
    %v1238 = vmul.f32 %v1236, %v1208
    %v1239 = vmul.f32 %v1237, 1.442695
    %v1240 = vpow.pop %v1239
    %v1241 = vmul.f32 %v1238, 1.442695
    %v1242 = vpow.pop %v1241
    %v1243 = vmul.f32 %v1233, %v1240
    %v1244 = vmul.f32 %v1234, %v1242
    %v1245 = vsub.f32 1.0, %v1243
    %v1246 = vsub.f32 1.0, %v1244
    %vm1247 = vcmp.lt.f32.partialorder %v1205, 0.0
    %vm1248 = vcmp.lt.f32.partialorder %v1206, 0.0
    %v1249 = vsub.f32 0.0, %v1245
    %v1250 = vsub.f32 0.0, %v1246
    %v1251 = vsel %vm1247, %v1249, %v1245
    %v1252 = vsel %vm1248, %v1250, %v1246
    %v1253 = vmul.f32 %v1199, 0.5
    %v1254 = vmul.f32 %v1202, 0.5
    %v1255 = vadd.f32 %v1251, 1.0
    %v1256 = vadd.f32 %v1252, 1.0
    %v1257 = vmul.f32 %v1253, %v1255
    %v1258 = vmul.f32 %v1254, %v1256
    %s1259 = scalar_lea.vmem %s12, 32
    %v1260 = vld [vmem:[%s1259] sm:$0xf]
    %v1261 = vld [vmem:[%s1259 + $0x4] sm:$0xf]
    %v1262 = vld [vmem:[%s1259 + $0x8] sm:$0xf]
    %v1263 = vld [vmem:[%s1259 + $0xc] sm:$0xf]
    %v1264 = vld [vmem:[%s1259 + $0x10] sm:$0xf]
    %v1265 = vld [vmem:[%s1259 + $0x14] sm:$0xf]
    %v1266 = vld [vmem:[%s1259 + $0x18] sm:$0xf]
    %v1267 = vld [vmem:[%s1259 + $0x1c] sm:$0xf]
    %v1268 = vpack.c.bf16 %v1258, %v1257
    %s1269 = scalar_lea.vmem %s13, 1
    %v1270 = vld [vmem:[%s1269] sm:$0x1]
    %v1272 = vlaneseq
    %v1273 = vshrl.u32 %v1272, 7
    %v1274 = vsub.s32 0, %v1273
    %v1275 = vrot.slane %v1270, %v1274
    %v1285 = vunpack.c.l.b16 %v1260
    %v1286 = vunpack.c.l.b16 %v1261
    %v1287 = vunpack.c.l.b16 %v1262
    %v1288 = vunpack.c.l.b16 %v1263
    %v1289 = vunpack.c.l.b16 %v1264
    %v1290 = vunpack.c.l.b16 %v1265
    %v1291 = vunpack.c.l.b16 %v1266
    %v1292 = vunpack.c.l.b16 %v1267
    %v1293 = vpack.c.b16 %v1286, %v1285
    %v1294 = vpack.c.b16 %v1288, %v1287
    %v1295 = vpack.c.b16 %v1290, %v1289
    %v1296 = vpack.c.b16 %v1292, %v1291
    %v1302 = vsel %vm654, %v1268, 0
    %1304 = vmatprep.subr.bf16.mxu0 0
    %1305 = vmatpush1.bf16.msra.mxu0 0
    %1306 = vmatprep.subr.bf16.mxu0 0
    %1307 = vmatpush1.bf16.msra.mxu0 0
    %1308 = vmatprep.subr.bf16.mxu0 0
    %1309 = vmatpush1.bf16.msra.mxu0 0
    %1310 = vmatprep.subr.bf16.mxu0 0
    %1311 = vmatpush1.bf16.msra.mxu0 0
    %1312 = vmatprep.subr.bf16.mxu0 0
    %1313 = vmatpush1.bf16.msra.mxu0 %v1296
    %1314 = vmatprep.subr.bf16.mxu0 0
    %1315 = vmatpush1.bf16.msra.mxu0 %v1295
    %1316 = vmatprep.subr.bf16.mxu0 0
    %1317 = vmatpush1.bf16.msra.mxu0 %v1294
    %1318 = vmatprep.subr.bf16.mxu0 0
    %1319 = vmatpush1.bf16.msra.mxu0 %v1293
    %1320 = vmatprep.subr.bf16.mxu0 0
    %1321 = vmatpush2.bf16.msra.mxu0 0
    %1322 = vmatprep.subr.bf16.mxu0 0
    %1323 = vmatpush2.bf16.msra.mxu0 0
    %1324 = vmatprep.subr.bf16.mxu0 0
    %1325 = vmatpush2.bf16.msra.mxu0 0
    %1326 = vmatprep.subr.bf16.mxu0 0
    %1327 = vmatpush2.bf16.msra.mxu0 0
    %1328 = vmatprep.subr.bf16.mxu0 0
    %1329 = vmatpush2.bf16.msra.mxu0 0
    %1330 = vmatprep.subr.bf16.mxu0 0
    %1331 = vmatpush2.bf16.msra.mxu0 0
    %1332 = vmatprep.subr.bf16.mxu0 0
    %1333 = vmatpush2.bf16.msra.mxu0 0
    %1334 = vmatprep.subr.bf16.mxu0 0
    %1335 = vmatpush2.bf16.msra.mxu0 0
    %1336 = vmatprep.mubr.bf16.mxu0 0
    %1337 = vmatmul.mubr.bf16.gmra.mxu0 %v1302
    %v1338 = vpop.f32.mrf.mxu0
    %v1339 = vadd.f32 %v1275, %v1338
    %v1340 = vpop.f32.mrf.mxu0
    %v1341 = vpop.f32.mrf.mxu0
    %v1342 = vadd.f32 %v1275, %v1341
    %v1343 = vpop.f32.mrf.mxu0
    %1344 = vdwg.mxu0
    %v1345 = vadd.f32 %v1133, %v1339
    %v1346 = vadd.f32 %v1134, %v1342
    %s1347 = scalar_lea.vmem %s14, 1
    %v1348 = vld [vmem:[%s1347] sm:$0x1]
    %s1349 = scalar_lea.vmem %s15, 1
    %v1350 = vld [vmem:[%s1349] sm:$0x1]
    %v1351 = vsel %vm59, %v1345, 0.0
    %1352 = vadd.xlane.f32.xlu0 %v1351
    %v1353 = vpop.xlane.xlu0 %1352
    %v1354 = vsel %vm59, %v1346, 0.0
    %1355 = vadd.xlane.f32.xlu0 %v1354
    %v1356 = vpop.xlane.xlu0 %1355
    %v1357 = vmul.f32 %v1353, %v66
    %v1358 = vmul.f32 %v1356, %v66
    %v1359 = vsub.f32 %v1345, %v1357
    %v1360 = vsub.f32 %v1346, %v1358
    %v1361 = vmul.f32 %v1359, %v1359
    %v1362 = vmul.f32 %v1360, %v1360
    %v1363 = vsel %vm59, %v1361, 0.0
    %1364 = vadd.xlane.f32.xlu0 %v1363
    %v1365 = vpop.xlane.xlu0 %1364
    %v1366 = vsel %vm59, %v1362, 0.0
    %1367 = vadd.xlane.f32.xlu0 %v1366
    %v1368 = vpop.xlane.xlu0 %1367
    %v1369 = vmul.f32 %v1365, %v66
    %v1370 = vmul.f32 %v1368, %v66
    %v1371 = vadd.f32 %v1369, 1e-12
    %v1372 = vadd.f32 %v1370, 1e-12
    %v1373 = vrsqrt.pop %v1371
    %v1374 = vrsqrt.pop %v1372
    %v1375 = vmul.f32 %v1359, %v1373
    %v1376 = vmul.f32 %v1360, %v1374
    %v1378 = vlaneseq
    %v1379 = vshrl.u32 %v1378, 7
    %v1380 = vsub.s32 0, %v1379
    %v1381 = vrot.slane %v1348, %v1380
    %v1383 = vmul.f32 %v1375, %v1381
    %v1384 = vmul.f32 %v1376, %v1381
    %v1386 = vlaneseq
    %v1387 = vshrl.u32 %v1386, 7
    %v1388 = vsub.s32 0, %v1387
    %v1389 = vrot.slane %v1350, %v1388
    %v1391 = vadd.f32 %v1383, %v1389
    %v1392 = vadd.f32 %v1384, %v1389
    %v1394 = vrot.slane %v1392, 7
    %vm1396 = vcmask 1040384
    %v1397 = vsel %vm1396, %v1391, %v1394
    %vm1398 = vcmask 254976
    %1399 = vst.msk [vmem:[#allocation2] sm:$0x3] %vm1398, %v1397
    // Predicated region
    $region66: #{bert_text_encoder_forward.1} parent=1 // pred_check
      _
    $region67: #{bert_text_encoder_forward.1} parent=1 // pred_check_branch
      %1401 = sbr.rel (0) target = $region69
    $region68: #{bert_text_encoder_forward.1} parent=1 // pred_region
      %s1403 = ssub.s32 32, 32
      %1404 = vsyncadd [#allocation3], %s1403
      %s1406 = sshll.u32 [#allocation2], 4
      %s1407 = int_to_ptr.vmem [resolvable:$true] %s1406
      %1409 = dma.vmem_to_hbm [thread:$0]  %s1407, 32, %s16, [#allocation3]
    $region69: #{bert_text_encoder_forward.1} parent=1 // pred_fallthru
      _
    // Predicated region
    $region70: #{bert_text_encoder_forward.1} parent=1 // pred_check
      _
    $region71: #{bert_text_encoder_forward.1} parent=1 // pred_check_branch
      %1411 = sbr.rel (0) target = $region73
    $region72: #{bert_text_encoder_forward.1} parent=1 // pred_region
      %1412 = dma.done [#allocation3], 32
    $region73: #{bert_text_encoder_forward.1} parent=1 // pred_fallthru
      _
    %1413 = vsyncpa [#allocation3], 1

</llo_original>
